<compile_context>
chip_gen: v5e
topology: v5e:2x2
jax: 0.10.0
libtpu: 0.0.40
codegen_flags: <defaults>
</compile_context>

<pallas_src>
import functools

import jax
import jax.numpy as jnp
from jax.experimental import pallas as pl
from jax.experimental.pallas import tpu as pltpu


def _dattention_kernel(x_ref, w1_ref, b1_ref, wa_ref, ba_ref, wb_ref, bb_ref,
                       scores_ref, m_ref, l_ref, macc_ref,
                       *, n_rows, tile_n, tiles_per_core):
    c = pl.program_id(0)          # chunk index ("parallel": megacore split)
    i = pl.program_id(1)          # tile index inside the chunk ("arbitrary")

    # Per-chunk online-softmax carry lives directly in the resident output
    # blocks (their index_map is constant over the inner axis), so no scratch
    # buffers and no separate finalize copy are needed.
    @pl.when(i == 0)
    def _init():
        m_ref[0] = jnp.full((1, 1), -jnp.inf, jnp.float32)
        l_ref[0] = jnp.zeros((1, 1), jnp.float32)
        macc_ref[0] = jnp.zeros(macc_ref.shape[1:], jnp.float32)

    # feature = ReLU(x @ W1 + b1). x / W1 arrive pre-cast to bf16; f32 accumulation.
    h = jnp.dot(x_ref[...], w1_ref[...],
                preferred_element_type=jnp.float32) + b1_ref[...]
    h = jnp.maximum(h, 0.0)                                   # (tile_n, L) f32
    hb = h.astype(jnp.bfloat16)      # single bf16 copy, reused by both matmuls
    # TODO(synk): only the act='relu', dropout=False (eval) path is implemented;
    # the GELU / Dropout(0.25)-training variants of `self.feature` are not wired in.

    # attention hidden: tanh(h @ Wa + ba)
    a1 = jnp.tanh(jnp.dot(hb, wa_ref[...],
                          preferred_element_type=jnp.float32) + ba_ref[...])

    # D -> 1 contraction on the MXU (instead of an XLU transpose of the whole
    # (tile_n, D) activation + cross-sublane reduce); only the narrow column is
    # transposed to a lane-dense (1, tile_n) score row.
    s_col = jnp.dot(a1, wb_ref[...], preferred_element_type=jnp.float32)
    s = jnp.transpose(s_col) + bb_ref[...]                    # (1, tile_n) f32

    # Mask padded rows of the final (possibly partial) tile.
    col = jax.lax.broadcasted_iota(jnp.int32, (1, tile_n), 1)
    row_idx = (c * tiles_per_core + i) * tile_n + col
    s = jnp.where(row_idx < n_rows, s, -jnp.inf)

    scores_ref[...] = s              # lane-dense raw-score output (1, tile_n)

    # Online-softmax update (f32). The first tile of every chunk contains at
    # least one real row (guaranteed by the wrapper), so m stays finite.
    m_prev = m_ref[0]                                         # (1, 1)
    m_new = jnp.maximum(m_prev, jnp.max(s, axis=1, keepdims=True))
    alpha = jnp.exp(m_prev - m_new)
    p = jnp.exp(s - m_new)                                    # (1, tile_n) f32
    l_ref[0] = alpha * l_ref[0] + jnp.sum(p, axis=1, keepdims=True)
    macc_ref[0] = alpha * macc_ref[0] + jnp.dot(
        p.astype(jnp.bfloat16), hb, preferred_element_type=jnp.float32)
    m_ref[0] = m_new


def dattention_forward(x, params, *, tile_n=1024, num_cores=None,
                       return_attn=False):
    """x: (N, n_features). Returns logits (1, C) [, A (1, N)]."""
    n, f = x.shape
    l = params["w1"].shape[1]
    d = params["wa"].shape[1]

    # 2-way chunking over N feeds both TensorCores on megacore parts (v7x); on
    # single-core parts the leading axis simply runs sequentially. Every chunk
    # must contain at least one real row (keeps the online-softmax carry finite).
    if num_cores is None:
        num_cores = 2 if n > tile_n else 1
    if n <= tile_n:
        num_cores = 1
    tiles_per_core = pl.cdiv(n, num_cores * tile_n)
    n_pad = num_cores * tiles_per_core * tile_n

    # Single fused pad+cast of the only large streamed array: bf16 halves the
    # HBM stream and the x double-buffer. Zero padding keeps padded-row h finite
    # (those rows are then killed by the -inf score mask in-kernel).
    xb = jnp.pad(x.astype(jnp.bfloat16), ((0, n_pad - n), (0, 0)))

    # Pre-cast the big weights once in the wrapper; Mosaic would otherwise
    # re-run the loop-invariant cast on every grid step.
    w1b = params["w1"].astype(jnp.bfloat16)
    wab = params["wa"].astype(jnp.bfloat16)

    kernel = functools.partial(_dattention_kernel, n_rows=n, tile_n=tile_n,
                               tiles_per_core=tiles_per_core)

    # Weights/biases: full-extent blocks with a constant index_map -> DMA'd
    # once, resident across the whole grid.
    full = lambda shape: pl.BlockSpec(shape, lambda c, i: (0, 0))

    grid_spec = pltpu.PrefetchScalarGridSpec(
        num_scalar_prefetch=0,
        grid=(num_cores, tiles_per_core),
        in_specs=[
            # x streams over N. (If xprof still shows exposed DMA, add
            # pipeline_mode=pl.Buffered(3) here.)
            pl.BlockSpec((tile_n, f), lambda c, i: (c * tiles_per_core + i, 0)),
            full((f, l)), full((1, l)),          # w1 (bf16), b1
            full((l, d)), full((1, d)),          # wa (bf16), ba
            full((d, 1)), full((1, 1)),          # wb, bb
        ],
        out_specs=(
            # raw scores, lane-dense
            pl.BlockSpec((1, tile_n), lambda c, i: (0, c * tiles_per_core + i)),
            # per-chunk online-softmax state (resident accumulator blocks)
            pl.BlockSpec((1, 1, 1), lambda c, i: (c, 0, 0)),   # running max
            pl.BlockSpec((1, 1, 1), lambda c, i: (c, 0, 0)),   # running denom
            pl.BlockSpec((1, 1, l), lambda c, i: (c, 0, 0)),   # running sum p@h
        ),
    )

    weight_bytes = 2 * (f * l + l * d) + 4 * (l + d + d + 1)
    cost = pl.CostEstimate(
        flops=int(2 * n_pad * (f * l + l * d + d + l)),
        transcendentals=int(n_pad * (d + 2)),
        bytes_accessed=int(2 * n_pad * f + weight_bytes
                           + 4 * (n_pad + num_cores * (2 + l))),
    )

    scores, m_parts, l_parts, macc_parts = pl.pallas_call(
        kernel,
        out_shape=(
            jax.ShapeDtypeStruct((1, n_pad), jnp.float32),
            jax.ShapeDtypeStruct((num_cores, 1, 1), jnp.float32),
            jax.ShapeDtypeStruct((num_cores, 1, 1), jnp.float32),
            jax.ShapeDtypeStruct((num_cores, 1, l), jnp.float32),
        ),
        grid_spec=grid_spec,
        compiler_params=pltpu.CompilerParams(
            # chunk axis feeds both TensorCores on megacore parts; the inner N
            # axis carries the softmax state, hence "arbitrary".
            dimension_semantics=("parallel", "arbitrary"),
            # fits v7x's 64 MiB physical VMEM; plenty of headroom on v5e/v6e.
            vmem_limit_bytes=48 * 1024 * 1024,
        ),
        cost_estimate=cost,
    )(xb, w1b, params["b1"], wab, params["ba"], params["wb"], params["bb"])

    # Merge the per-chunk online-softmax states and run the tiny classifier in
    # plain JAX (exact normalization; O(L) work).
    m_parts = m_parts[:, 0, :]                   # (num_cores, 1)
    l_parts = l_parts[:, 0, :]                   # (num_cores, 1)
    macc_parts = macc_parts[:, 0, :]             # (num_cores, L)
    m_glob = jnp.max(m_parts, axis=0, keepdims=True)            # (1, 1)
    scale = jnp.exp(m_parts - m_glob)                           # (num_cores, 1)
    l_glob = jnp.sum(scale * l_parts)
    bag = jnp.sum(scale * macc_parts, axis=0, keepdims=True) / l_glob   # (1, L)
    logits = bag @ params["wc"] + params["bc"]                          # (1, C)
    # TODO(synk): multi-bag batching (an extra leading 'parallel' bag axis) is
    # not implemented; the module processes one bag per forward.

    if return_attn:
        attn = jax.nn.softmax(scores[:, :n], axis=-1)   # (1, N) = torch's A
        return logits, attn
    return logits


def init_params(key, n_features, n_classes, L=512, D=128):
    """torch.nn.Linear-style uniform init; weights stored as (in, out)."""
    def linear(k, fan_in, fan_out):
        k1, k2 = jax.random.split(k)
        bound = 1.0 / jnp.sqrt(fan_in)
        w = jax.random.uniform(k1, (fan_in, fan_out), jnp.float32, -bound, bound)
        b = jax.random.uniform(k2, (1, fan_out), jnp.float32, -bound, bound)
        return w, b

    k1, k2, k3, k4 = jax.random.split(key, 4)
    w1, b1 = linear(k1, n_features, L)     # feature: Linear(n_features, 512)
    wa, ba = linear(k2, L, D)              # attention[0]: Linear(512, 128)
    wb, bb = linear(k3, D, 1)              # attention[2]: Linear(128, 1) -> (D, 1)
    wc, bc = linear(k4, L, n_classes)      # classifier: Linear(512, n_classes)
    return {"w1": w1, "b1": b1, "wa": wa, "ba": ba,
            "wb": wb, "bb": bb, "wc": wc, "bc": bc}


def dattention_reference(x, params):
    """Plain-JAX f32 reference of the same forward."""
    h = jnp.maximum(x @ params["w1"] + params["b1"], 0.0)
    a1 = jnp.tanh(h @ params["wa"] + params["ba"])
    s = a1 @ params["wb"] + params["bb"]             # (N, 1)
    a = jax.nn.softmax(s.T, axis=-1)                 # (1, N)
    m = a @ h                                        # (1, L)
    return m @ params["wc"] + params["bc"], a        # (1, C), (1, N)


if __name__ == "__main__":
    # Small but exercising both chunks and a partial/fully-padded tile:
    # N=300, tile_n=128 -> 2 chunks x 2 tiles, chunk 1 has 44 real rows.
    N, n_features, n_classes = 300, 256, 4

    key = jax.random.PRNGKey(0)
    k_x, k_p = jax.random.split(key)
    x = jax.random.normal(k_x, (N, n_features), jnp.float32)
    params = init_params(k_p, n_features, n_classes)

    fwd = jax.jit(functools.partial(dattention_forward,
                                    tile_n=128, return_attn=True))
    logits, A = fwd(x, params)
    logits, A = jax.block_until_ready((logits, A))

    ref_logits, ref_A = dattention_reference(x, params)

    assert logits.shape == (1, n_classes)
    assert A.shape == (1, N)
    assert jnp.allclose(jnp.sum(A), 1.0, atol=1e-4)
    assert jnp.allclose(A, ref_A, atol=2e-3)
    assert jnp.allclose(logits, ref_logits, atol=3e-2, rtol=3e-2)

    print("KERNEL_OK")
</pallas_src>

<mosaic_0001>
module attributes {stable_mosaic.version = 11 : i64} {
  func.func @_dattention_kernel(%arg0: i32, %arg1: i32, %arg2: memref<128x256xbf16, #tpu.memory_space<vmem>>, %arg3: memref<256x512xbf16, #tpu.memory_space<vmem>>, %arg4: memref<1x512xf32, #tpu.memory_space<vmem>>, %arg5: memref<512x128xbf16, #tpu.memory_space<vmem>>, %arg6: memref<1x128xf32, #tpu.memory_space<vmem>>, %arg7: memref<128x1xf32, #tpu.memory_space<vmem>>, %arg8: memref<1x1xf32, #tpu.memory_space<vmem>>, %arg9: memref<1x128xf32, #tpu.memory_space<vmem>>, %arg10: memref<1x1x1xf32, #tpu.memory_space<vmem>>, %arg11: memref<1x1x1xf32, #tpu.memory_space<vmem>>, %arg12: memref<1x1x512xf32, #tpu.memory_space<vmem>>) attributes {dimension_semantics = [#tpu.dimension_semantics<parallel>, #tpu.dimension_semantics<arbitrary>], iteration_bounds = array<i64: 2, 2>, scalar_prefetch = 0 : i64, scratch_operands = 0 : i64, tpu.core_type = #tpu.core_type<tc>, window_params = [{transform_indices = @transform_0, window_bounds = array<i64: 128, 256>}, {pipeline_mode = #tpu.pipeline_mode<synchronous>, transform_indices = @transform_1, window_bounds = array<i64: 256, 512>}, {pipeline_mode = #tpu.pipeline_mode<synchronous>, transform_indices = @transform_2, window_bounds = array<i64: 1, 512>}, {pipeline_mode = #tpu.pipeline_mode<synchronous>, transform_indices = @transform_3, window_bounds = array<i64: 512, 128>}, {pipeline_mode = #tpu.pipeline_mode<synchronous>, transform_indices = @transform_4, window_bounds = array<i64: 1, 128>}, {pipeline_mode = #tpu.pipeline_mode<synchronous>, transform_indices = @transform_5, window_bounds = array<i64: 128, 1>}, {pipeline_mode = #tpu.pipeline_mode<synchronous>, transform_indices = @transform_6, window_bounds = array<i64: 1, 1>}, {transform_indices = @transform_7, window_bounds = array<i64: 1, 128>}, {transform_indices = @transform_8, window_bounds = array<i64: 1, 1, 1>}, {transform_indices = @transform_9, window_bounds = array<i64: 1, 1, 1>}, {transform_indices = @transform_10, window_bounds = array<i64: 1, 1, 512>}]} {
    %c0_i32 = arith.constant 0 : i32
    %0 = arith.cmpi eq, %arg1, %c0_i32 : i32
    %1 = arith.extui %0 : i1 to i32
    %c0_i32_0 = arith.constant 0 : i32
    %2 = arith.cmpi ne, %1, %c0_i32_0 : i32
    scf.if %2 {
      %cst_41 = arith.constant 0xFF800000 : f32
      %67 = vector.broadcast %cst_41 : f32 to vector<1x1xf32>
      %c0_42 = arith.constant 0 : index
      %c0_43 = arith.constant 0 : index
      %c0_44 = arith.constant 0 : index
      %68 = vector.load %arg10[%c0_42, %c0_43, %c0_44] : memref<1x1x1xf32, #tpu.memory_space<vmem>>, vector<1x1x1xf32>
      %69 = vector.shape_cast %68 : vector<1x1x1xf32> to vector<1x1xf32>
      %70 = vector.shape_cast %67 : vector<1x1xf32> to vector<1x1x1xf32>
      tpu.vector_store %arg10[%c0_42, %c0_43, %c0_44], %70 {strides = array<i32>} : memref<1x1x1xf32, #tpu.memory_space<vmem>>, vector<1x1x1xf32>,
      %cst_45 = arith.constant 0.000000e+00 : f32
      %71 = vector.broadcast %cst_45 : f32 to vector<1x1xf32>
      %c0_46 = arith.constant 0 : index
      %c0_47 = arith.constant 0 : index
      %c0_48 = arith.constant 0 : index
      %72 = vector.load %arg11[%c0_46, %c0_47, %c0_48] : memref<1x1x1xf32, #tpu.memory_space<vmem>>, vector<1x1x1xf32>
      %73 = vector.shape_cast %72 : vector<1x1x1xf32> to vector<1x1xf32>
      %74 = vector.shape_cast %71 : vector<1x1xf32> to vector<1x1x1xf32>
      tpu.vector_store %arg11[%c0_46, %c0_47, %c0_48], %74 {strides = array<i32>} : memref<1x1x1xf32, #tpu.memory_space<vmem>>, vector<1x1x1xf32>,
      %cst_49 = arith.constant 0.000000e+00 : f32
      %75 = vector.broadcast %cst_49 : f32 to vector<1x512xf32>
      %c0_50 = arith.constant 0 : index
      %c0_51 = arith.constant 0 : index
      %c0_52 = arith.constant 0 : index
      %76 = vector.load %arg12[%c0_50, %c0_51, %c0_52] : memref<1x1x512xf32, #tpu.memory_space<vmem>>, vector<1x1x512xf32>
      %77 = vector.shape_cast %76 : vector<1x1x512xf32> to vector<1x512xf32>
      %78 = vector.shape_cast %75 : vector<1x512xf32> to vector<1x1x512xf32>
      tpu.vector_store %arg12[%c0_50, %c0_51, %c0_52], %78 {strides = array<i32>} : memref<1x1x512xf32, #tpu.memory_space<vmem>>, vector<1x1x512xf32>,
    } else {
    }
    %c0 = arith.constant 0 : index
    %c0_1 = arith.constant 0 : index
    %3 = vector.load %arg2[%c0, %c0_1] : memref<128x256xbf16, #tpu.memory_space<vmem>>, vector<128x256xbf16>
    %c0_2 = arith.constant 0 : index
    %c0_3 = arith.constant 0 : index
    %4 = vector.load %arg3[%c0_2, %c0_3] : memref<256x512xbf16, #tpu.memory_space<vmem>>, vector<256x512xbf16>
    %cst = arith.constant dense<0.000000e+00> : vector<128x512xf32>
    %5 = tpu.matmul %3, %4, %cst {dimension_numbers = #tpu.dot_dimension_numbers<[1], [0], [0], [1], [0, 0, 1, 1], [], []>} : vector<128x256xbf16>, vector<256x512xbf16>, vector<128x512xf32> -> vector<128x512xf32>
    %c0_4 = arith.constant 0 : index
    %c0_5 = arith.constant 0 : index
    %6 = vector.load %arg4[%c0_4, %c0_5] : memref<1x512xf32, #tpu.memory_space<vmem>>, vector<1x512xf32>
    %7 = vector.broadcast %6 : vector<1x512xf32> to vector<128x512xf32>
    %8 = arith.addf %5, %7 : vector<128x512xf32>
    %cst_6 = arith.constant 0.000000e+00 : f32
    %9 = vector.broadcast %cst_6 : f32 to vector<128x512xf32>
    %10 = arith.maximumf %8, %9 : vector<128x512xf32>
    %11 = arith.truncf %10 : vector<128x512xf32> to vector<128x512xbf16>
    %c0_7 = arith.constant 0 : index
    %c0_8 = arith.constant 0 : index
    %12 = vector.load %arg5[%c0_7, %c0_8] : memref<512x128xbf16, #tpu.memory_space<vmem>>, vector<512x128xbf16>
    %cst_9 = arith.constant dense<0.000000e+00> : vector<128x128xf32>
    %13 = tpu.matmul %11, %12, %cst_9 {dimension_numbers = #tpu.dot_dimension_numbers<[1], [0], [0], [1], [0, 0, 1, 1], [], []>} : vector<128x512xbf16>, vector<512x128xbf16>, vector<128x128xf32> -> vector<128x128xf32>
    %c0_10 = arith.constant 0 : index
    %c0_11 = arith.constant 0 : index
    %14 = vector.load %arg6[%c0_10, %c0_11] : memref<1x128xf32, #tpu.memory_space<vmem>>, vector<1x128xf32>
    %15 = vector.broadcast %14 : vector<1x128xf32> to vector<128x128xf32>
    %16 = arith.addf %13, %15 : vector<128x128xf32>
    %17 = math.tanh %16 : vector<128x128xf32>
    %c0_12 = arith.constant 0 : index
    %c0_13 = arith.constant 0 : index
    %18 = vector.load %arg7[%c0_12, %c0_13] : memref<128x1xf32, #tpu.memory_space<vmem>>, vector<128x1xf32>
    %cst_14 = arith.constant dense<0.000000e+00> : vector<128x1xf32>
    %19 = tpu.matmul %17, %18, %cst_14 {dimension_numbers = #tpu.dot_dimension_numbers<[1], [0], [0], [1], [0, 0, 1, 1], [], []>} : vector<128x128xf32>, vector<128x1xf32>, vector<128x1xf32> -> vector<128x1xf32>
    %20 = tpu.transpose %19, [1, 0] : vector<128x1xf32> -> vector<1x128xf32>
    %c0_15 = arith.constant 0 : index
    %c0_16 = arith.constant 0 : index
    %21 = vector.load %arg8[%c0_15, %c0_16] : memref<1x1xf32, #tpu.memory_space<vmem>>, vector<1x1xf32>
    %22 = vector.broadcast %21 : vector<1x1xf32> to vector<1x128xf32>
    %23 = arith.addf %20, %22 : vector<1x128xf32>
    %24 = tpu.iota {dimensions = array<i32: 1>} : vector<1x128xi32>
    %c2_i32 = arith.constant 2 : i32
    %25 = arith.muli %arg0, %c2_i32 : i32
    %26 = arith.addi %25, %arg1 : i32
    %c128_i32 = arith.constant 128 : i32
    %27 = arith.muli %26, %c128_i32 : i32
    %28 = vector.broadcast %27 : i32 to vector<1x128xi32>
    %29 = arith.addi %28, %24 : vector<1x128xi32>
    %c300_i32 = arith.constant 300 : i32
    %30 = vector.broadcast %c300_i32 : i32 to vector<1x128xi32>
    %31 = arith.cmpi slt, %29, %30 : vector<1x128xi32>
    %cst_17 = arith.constant 0xFF800000 : f32
    %32 = vector.broadcast %cst_17 : f32 to vector<1x128xf32>
    %33 = arith.select %31, %23, %32 : vector<1x128xi1>, vector<1x128xf32>
    %c0_18 = arith.constant 0 : index
    %c0_19 = arith.constant 0 : index
    %34 = vector.load %arg9[%c0_18, %c0_19] : memref<1x128xf32, #tpu.memory_space<vmem>>, vector<1x128xf32>
    tpu.vector_store %arg9[%c0_18, %c0_19], %33 {strides = array<i32>} : memref<1x128xf32, #tpu.memory_space<vmem>>, vector<1x128xf32>,
    %c0_20 = arith.constant 0 : index
    %c0_21 = arith.constant 0 : index
    %c0_22 = arith.constant 0 : index
    %35 = vector.load %arg10[%c0_20, %c0_21, %c0_22] : memref<1x1x1xf32, #tpu.memory_space<vmem>>, vector<1x1x1xf32>
    %36 = vector.shape_cast %35 : vector<1x1x1xf32> to vector<1x1xf32>
    %cst_23 = arith.constant dense<0xFF800000> : vector<1xf32>
    %37 = vector.multi_reduction <maximumf>, %33, %cst_23 [1] : vector<1x128xf32> to vector<1xf32>
    %38 = vector.shape_cast %37 : vector<1xf32> to vector<1x1xf32>
    %39 = arith.maximumf %36, %38 : vector<1x1xf32>
    %40 = arith.subf %36, %39 : vector<1x1xf32>
    %41 = math.exp %40 : vector<1x1xf32>
    %42 = vector.broadcast %39 : vector<1x1xf32> to vector<1x128xf32>
    %43 = arith.subf %33, %42 : vector<1x128xf32>
    %44 = math.exp %43 : vector<1x128xf32>
    %c0_24 = arith.constant 0 : index
    %c0_25 = arith.constant 0 : index
    %c0_26 = arith.constant 0 : index
    %45 = vector.load %arg11[%c0_24, %c0_25, %c0_26] : memref<1x1x1xf32, #tpu.memory_space<vmem>>, vector<1x1x1xf32>
    %46 = vector.shape_cast %45 : vector<1x1x1xf32> to vector<1x1xf32>
    %47 = arith.mulf %41, %46 : vector<1x1xf32>
    %cst_27 = arith.constant dense<0.000000e+00> : vector<1xf32>
    %48 = vector.multi_reduction <add>, %44, %cst_27 [1] : vector<1x128xf32> to vector<1xf32>
    %49 = vector.shape_cast %48 : vector<1xf32> to vector<1x1xf32>
    %50 = arith.addf %47, %49 : vector<1x1xf32>
    %c0_28 = arith.constant 0 : index
    %c0_29 = arith.constant 0 : index
    %c0_30 = arith.constant 0 : index
    %51 = vector.load %arg11[%c0_28, %c0_29, %c0_30] : memref<1x1x1xf32, #tpu.memory_space<vmem>>, vector<1x1x1xf32>
    %52 = vector.shape_cast %51 : vector<1x1x1xf32> to vector<1x1xf32>
    %53 = vector.shape_cast %50 : vector<1x1xf32> to vector<1x1x1xf32>
    tpu.vector_store %arg11[%c0_28, %c0_29, %c0_30], %53 {strides = array<i32>} : memref<1x1x1xf32, #tpu.memory_space<vmem>>, vector<1x1x1xf32>,
    %c0_31 = arith.constant 0 : index
    %c0_32 = arith.constant 0 : index
    %c0_33 = arith.constant 0 : index
    %54 = vector.load %arg12[%c0_31, %c0_32, %c0_33] : memref<1x1x512xf32, #tpu.memory_space<vmem>>, vector<1x1x512xf32>
    %55 = vector.shape_cast %54 : vector<1x1x512xf32> to vector<1x512xf32>
    %56 = vector.broadcast %41 : vector<1x1xf32> to vector<1x512xf32>
    %57 = arith.mulf %56, %55 : vector<1x512xf32>
    %58 = arith.truncf %44 : vector<1x128xf32> to vector<1x128xbf16>
    %cst_34 = arith.constant dense<0.000000e+00> : vector<1x512xf32>
    %59 = tpu.matmul %58, %11, %cst_34 {dimension_numbers = #tpu.dot_dimension_numbers<[1], [0], [0], [1], [0, 0, 1, 1], [], []>} : vector<1x128xbf16>, vector<128x512xbf16>, vector<1x512xf32> -> vector<1x512xf32>
    %60 = arith.addf %57, %59 : vector<1x512xf32>
    %c0_35 = arith.constant 0 : index
    %c0_36 = arith.constant 0 : index
    %c0_37 = arith.constant 0 : index
    %61 = vector.load %arg12[%c0_35, %c0_36, %c0_37] : memref<1x1x512xf32, #tpu.memory_space<vmem>>, vector<1x1x512xf32>
    %62 = vector.shape_cast %61 : vector<1x1x512xf32> to vector<1x512xf32>
    %63 = vector.shape_cast %60 : vector<1x512xf32> to vector<1x1x512xf32>
    tpu.vector_store %arg12[%c0_35, %c0_36, %c0_37], %63 {strides = array<i32>} : memref<1x1x512xf32, #tpu.memory_space<vmem>>, vector<1x1x512xf32>,
    %c0_38 = arith.constant 0 : index
    %c0_39 = arith.constant 0 : index
    %c0_40 = arith.constant 0 : index
    %64 = vector.load %arg10[%c0_38, %c0_39, %c0_40] : memref<1x1x1xf32, #tpu.memory_space<vmem>>, vector<1x1x1xf32>
    %65 = vector.shape_cast %64 : vector<1x1x1xf32> to vector<1x1xf32>
    %66 = vector.shape_cast %39 : vector<1x1xf32> to vector<1x1x1xf32>
    tpu.vector_store %arg10[%c0_38, %c0_39, %c0_40], %66 {strides = array<i32>} : memref<1x1x1xf32, #tpu.memory_space<vmem>>, vector<1x1x1xf32>,
    return
  }
  func.func @transform_0(%arg0: i32, %arg1: i32) -> (i32, i32) {
    %c2_i32 = arith.constant 2 : i32
    %0 = arith.muli %arg0, %c2_i32 : i32
    %1 = arith.addi %0, %arg1 : i32
    %c0_i32 = arith.constant 0 : i32
    %c0_i32_0 = arith.constant 0 : i32
    return %1, %c0_i32 : i32, i32
  }
  func.func @transform_1(%arg0: i32, %arg1: i32) -> (i32, i32) {
    %c0_i32 = arith.constant 0 : i32
    %c0_i32_0 = arith.constant 0 : i32
    %c0_i32_1 = arith.constant 0 : i32
    return %c0_i32, %c0_i32_0 : i32, i32
  }
  func.func @transform_2(%arg0: i32, %arg1: i32) -> (i32, i32) {
    %c0_i32 = arith.constant 0 : i32
    %c0_i32_0 = arith.constant 0 : i32
    %c0_i32_1 = arith.constant 0 : i32
    return %c0_i32, %c0_i32_0 : i32, i32
  }
  func.func @transform_3(%arg0: i32, %arg1: i32) -> (i32, i32) {
    %c0_i32 = arith.constant 0 : i32
    %c0_i32_0 = arith.constant 0 : i32
    %c0_i32_1 = arith.constant 0 : i32
    return %c0_i32, %c0_i32_0 : i32, i32
  }
  func.func @transform_4(%arg0: i32, %arg1: i32) -> (i32, i32) {
    %c0_i32 = arith.constant 0 : i32
    %c0_i32_0 = arith.constant 0 : i32
    %c0_i32_1 = arith.constant 0 : i32
    return %c0_i32, %c0_i32_0 : i32, i32
  }
  func.func @transform_5(%arg0: i32, %arg1: i32) -> (i32, i32) {
    %c0_i32 = arith.constant 0 : i32
    %c0_i32_0 = arith.constant 0 : i32
    %c0_i32_1 = arith.constant 0 : i32
    return %c0_i32, %c0_i32_0 : i32, i32
  }
  func.func @transform_6(%arg0: i32, %arg1: i32) -> (i32, i32) {
    %c0_i32 = arith.constant 0 : i32
    %c0_i32_0 = arith.constant 0 : i32
    %c0_i32_1 = arith.constant 0 : i32
    return %c0_i32, %c0_i32_0 : i32, i32
  }
  func.func @transform_7(%arg0: i32, %arg1: i32) -> (i32, i32) {
    %c2_i32 = arith.constant 2 : i32
    %0 = arith.muli %arg0, %c2_i32 : i32
    %1 = arith.addi %0, %arg1 : i32
    %c0_i32 = arith.constant 0 : i32
    %c0_i32_0 = arith.constant 0 : i32
    return %c0_i32, %1 : i32, i32
  }
  func.func @transform_8(%arg0: i32, %arg1: i32) -> (i32, i32, i32) {
    %c0_i32 = arith.constant 0 : i32
    %c0_i32_0 = arith.constant 0 : i32
    %c0_i32_1 = arith.constant 0 : i32
    return %arg0, %c0_i32, %c0_i32_0 : i32, i32, i32
  }
  func.func @transform_9(%arg0: i32, %arg1: i32) -> (i32, i32, i32) {
    %c0_i32 = arith.constant 0 : i32
    %c0_i32_0 = arith.constant 0 : i32
    %c0_i32_1 = arith.constant 0 : i32
    return %arg0, %c0_i32, %c0_i32_0 : i32, i32, i32
  }
  func.func @transform_10(%arg0: i32, %arg1: i32) -> (i32, i32, i32) {
    %c0_i32 = arith.constant 0 : i32
    %c0_i32_0 = arith.constant 0 : i32
    %c0_i32_1 = arith.constant 0 : i32
    return %arg0, %c0_i32, %c0_i32_0 : i32, i32, i32
  }
}

</mosaic_0001>

<llo_original>
// kernel: dattention_forward.1
$region0: #{dattention_forward.1}
  #allocation0 [shape = 'u32[]', space=smem, size = 0x4, offset = 0x4, fixed_abs, tag = 'smem constant byte address 0x4 - core index']
  #allocation1 [shape = 'u32[72,128]{1,0:T(1,128)}', space=vmem, size = 0x9000, scoped, tag = 'internal scratch']
  #allocation2 [shape = 'f32[1,1]{1,0:T(1,128)S(1)}', space=vmem, size = 0x200, scoped, tag = 'scoped memory for dattention_forward.1']
  %s0 = inlined_call_operand.vmem [shape: bf16[512,256], index: 0, kind: input, shape index: {}]
  %s1 = inlined_call_operand.vmem [shape: bf16[256,512], index: 1, kind: input, shape index: {}]
  %s2 = inlined_call_operand.vmem [shape: f32[1,512], index: 2, kind: input, shape index: {}]
  %s3 = inlined_call_operand.vmem [shape: bf16[512,128], index: 3, kind: input, shape index: {}]
  %s4 = inlined_call_operand.vmem [shape: f32[1,128], index: 4, kind: input, shape index: {}]
  %s5 = inlined_call_operand.vmem [shape: f32[128,1], index: 5, kind: input, shape index: {}]
  %s6 = inlined_call_operand.<no memory space> [shape: f32[1,1], index: 6, kind: input, shape index: {}]
  %s7 = inlined_call_operand.vmem [shape: f32[1,512], index: 7, kind: output, shape index: {0}]
  %s8 = inlined_call_operand.vmem [shape: f32[2,1,1], index: 8, kind: output, shape index: {1}]
  %s9 = inlined_call_operand.vmem [shape: f32[2,1,1], index: 9, kind: output, shape index: {2}]
  %s10 = inlined_call_operand.vmem [shape: f32[2,1,512], index: 10, kind: output, shape index: {3}]
  %11 = xla_tuple %s7, %s8, %s9, %s10
  %s12 = sld [smem:[#allocation0]]
  $region89: #{dattention_forward.1} parent=0
    _
  %s14 = ssub.s32 1, %s12
  %s15 = scalar_select 0, %s14, %s12
  %v16 = vstv %s6
  %17 = vst [vmem:[#allocation2] sm:$0x1] %v16
  loop: start=0, step=1, limit=6
  $region2: #{dattention_forward.1} parent=0 // loop_pre_header
    _
  $region3: #{dattention_forward.1} parent=0 // loop_header
    %s19 = sphi 0, %s23
    %p20 = scmp.ge.s32.totalorder %s19, 6
    %s26 = sphi 0, %s38
    %s27 = sphi 0, %s34
    %s28 = sphi 0, %s26
    %s29 = sphi 0, %s27
    %s30 = sphi 0, %s28
    %s31 = sphi 0, %s29
    %s45 = sphi 0, %s47
    %s48 = sphi 0, %s45
    %s49 = sphi 0, %s48
    %s65 = sphi 0, %s49
    %s69 = sphi 0, %s69
    %s71 = sphi 0, %s69
    %s72 = sphi 0, %s71
    %s86 = sphi 0, %s72
    %s90 = sphi 0, %s90
    %s92 = sphi 0, %s90
    %s93 = sphi 0, %s92
    %s107 = sphi 0, %s93
    %s111 = sphi 0, %s111
    %s113 = sphi 0, %s111
    %s114 = sphi 0, %s113
    %s128 = sphi 0, %s114
    %s132 = sphi 0, %s132
    %s134 = sphi 0, %s132
    %s135 = sphi 0, %s134
    %s149 = sphi 0, %s135
    %s153 = sphi 0, %s153
    %s155 = sphi 0, %s153
    %s156 = sphi 0, %s155
    %s170 = sphi 0, %s156
    %s174 = sphi 0, %s174
    %s176 = sphi 0, %s174
    %s177 = sphi 0, %s176
    %s191 = sphi 0, %s177
    %s201 = sphi 0, %s203
    %s204 = sphi 0, %s201
    %s205 = sphi 0, %s204
    %s221 = sphi 0, %s205
    %s227 = sphi 0, %s229
    %s230 = sphi 0, %s227
    %s231 = sphi 0, %s230
    %s247 = sphi 0, %s231
    %s253 = sphi 0, %s255
    %s256 = sphi 0, %s253
    %s257 = sphi 0, %s256
    %s273 = sphi 0, %s257
    %s279 = sphi 0, %s281
    %s282 = sphi 0, %s279
    %s283 = sphi 0, %s282
    %s299 = sphi 0, %s283
  $region4: #{dattention_forward.1} parent=0 // loop_header_branch
    %22 = sbr.rel (%p20) target = $region8
  $region5: #{dattention_forward.1} parent=0 // loop_body
    %s24 = ssub.s32 %s19, 1
    %s25 = ssub.s32 %s19, 2
    %s32 = sadd.s32 1, %s27
    %p33 = scmp.ge.s32.totalorder %s32, 2
    %s34 = scalar_select %p33, 0, %s32
    %s35 = sadd.s32 1, %s26
    %s36 = scalar_select %p33, %s35, %s26
    %p37 = scmp.ge.s32.totalorder %s36, 2
    %s38 = scalar_select %p37, 0, %s36
    %s39 = smul.u32 %s26, 2
    %s40 = sadd.s32 %s39, %s27
    %s41 = smul.u32 %s38, 2
    %s42 = sadd.s32 %s41, %s34
    %s43 = ssub.s32 %s40, %s42
    %p44 = scmp.eq.s32.totalorder %s43, 0
    %s46 = sadd.s32 %s45, 1
    %s47 = scalar_select %p44, %s45, %s46
    %p50 = pneg %p44
    %p51 = scmp.eq.s32.totalorder %s19, 3
    %p52 = por %p50, %p51
    %p53 = scmp.ne.s32.totalorder %s45, %s48
    %p54 = scmp.eq.s32.totalorder %s19, 0
    %p55 = por %p53, %p54
    %p56 = scmp.ne.s32.totalorder %s45, %s48
    %p57 = scmp.eq.s32.totalorder %s24, 3
    %p58 = por %p56, %p57
    %p59 = scmp.ne.s32.totalorder %s48, %s49
    %p60 = scmp.eq.s32.totalorder %s24, 0
    %p61 = por %p59, %p60
    %p62 = scmp.ne.s32.totalorder %s48, %s49
    %p63 = scmp.eq.s32.totalorder %s25, 3
    %p64 = por %p62, %p63
    %p66 = scmp.ne.s32.totalorder %s49, %s65
    %p67 = scmp.eq.s32.totalorder %s25, 0
    %p68 = por %p66, %p67
    %s70 = sadd.s32 %s69, 1
    %p73 = scmp.eq.s32.totalorder %s19, 3
    %p74 = scmp.ne.s32.totalorder %s69, %s71
    %p75 = scmp.eq.s32.totalorder %s19, 0
    %p76 = por %p74, %p75
    %p77 = scmp.ne.s32.totalorder %s69, %s71
    %p78 = scmp.eq.s32.totalorder %s24, 3
    %p79 = por %p77, %p78
    %p80 = scmp.ne.s32.totalorder %s71, %s72
    %p81 = scmp.eq.s32.totalorder %s24, 0
    %p82 = por %p80, %p81
    %p83 = scmp.ne.s32.totalorder %s71, %s72
    %p84 = scmp.eq.s32.totalorder %s25, 3
    %p85 = por %p83, %p84
    %p87 = scmp.ne.s32.totalorder %s72, %s86
    %p88 = scmp.eq.s32.totalorder %s25, 0
    %p89 = por %p87, %p88
    %s91 = sadd.s32 %s90, 1
    %p94 = scmp.eq.s32.totalorder %s19, 3
    %p95 = scmp.ne.s32.totalorder %s90, %s92
    %p96 = scmp.eq.s32.totalorder %s19, 0
    %p97 = por %p95, %p96
    %p98 = scmp.ne.s32.totalorder %s90, %s92
    %p99 = scmp.eq.s32.totalorder %s24, 3
    %p100 = por %p98, %p99
    %p101 = scmp.ne.s32.totalorder %s92, %s93
    %p102 = scmp.eq.s32.totalorder %s24, 0
    %p103 = por %p101, %p102
    %p104 = scmp.ne.s32.totalorder %s92, %s93
    %p105 = scmp.eq.s32.totalorder %s25, 3
    %p106 = por %p104, %p105
    %p108 = scmp.ne.s32.totalorder %s93, %s107
    %p109 = scmp.eq.s32.totalorder %s25, 0
    %p110 = por %p108, %p109
    %s112 = sadd.s32 %s111, 1
    %p115 = scmp.eq.s32.totalorder %s19, 3
    %p116 = scmp.ne.s32.totalorder %s111, %s113
    %p117 = scmp.eq.s32.totalorder %s19, 0
    %p118 = por %p116, %p117
    %p119 = scmp.ne.s32.totalorder %s111, %s113
    %p120 = scmp.eq.s32.totalorder %s24, 3
    %p121 = por %p119, %p120
    %p122 = scmp.ne.s32.totalorder %s113, %s114
    %p123 = scmp.eq.s32.totalorder %s24, 0
    %p124 = por %p122, %p123
    %p125 = scmp.ne.s32.totalorder %s113, %s114
    %p126 = scmp.eq.s32.totalorder %s25, 3
    %p127 = por %p125, %p126
    %p129 = scmp.ne.s32.totalorder %s114, %s128
    %p130 = scmp.eq.s32.totalorder %s25, 0
    %p131 = por %p129, %p130
    %s133 = sadd.s32 %s132, 1
    %p136 = scmp.eq.s32.totalorder %s19, 3
    %p137 = scmp.ne.s32.totalorder %s132, %s134
    %p138 = scmp.eq.s32.totalorder %s19, 0
    %p139 = por %p137, %p138
    %p140 = scmp.ne.s32.totalorder %s132, %s134
    %p141 = scmp.eq.s32.totalorder %s24, 3
    %p142 = por %p140, %p141
    %p143 = scmp.ne.s32.totalorder %s134, %s135
    %p144 = scmp.eq.s32.totalorder %s24, 0
    %p145 = por %p143, %p144
    %p146 = scmp.ne.s32.totalorder %s134, %s135
    %p147 = scmp.eq.s32.totalorder %s25, 3
    %p148 = por %p146, %p147
    %p150 = scmp.ne.s32.totalorder %s135, %s149
    %p151 = scmp.eq.s32.totalorder %s25, 0
    %p152 = por %p150, %p151
    %s154 = sadd.s32 %s153, 1
    %p157 = scmp.eq.s32.totalorder %s19, 3
    %p158 = scmp.ne.s32.totalorder %s153, %s155
    %p159 = scmp.eq.s32.totalorder %s19, 0
    %p160 = por %p158, %p159
    %p161 = scmp.ne.s32.totalorder %s153, %s155
    %p162 = scmp.eq.s32.totalorder %s24, 3
    %p163 = por %p161, %p162
    %p164 = scmp.ne.s32.totalorder %s155, %s156
    %p165 = scmp.eq.s32.totalorder %s24, 0
    %p166 = por %p164, %p165
    %p167 = scmp.ne.s32.totalorder %s155, %s156
    %p168 = scmp.eq.s32.totalorder %s25, 3
    %p169 = por %p167, %p168
    %p171 = scmp.ne.s32.totalorder %s156, %s170
    %p172 = scmp.eq.s32.totalorder %s25, 0
    %p173 = por %p171, %p172
    %s175 = sadd.s32 %s174, 1
    %p178 = scmp.eq.s32.totalorder %s19, 3
    %p179 = scmp.ne.s32.totalorder %s174, %s176
    %p180 = scmp.eq.s32.totalorder %s19, 0
    %p181 = por %p179, %p180
    %p182 = scmp.ne.s32.totalorder %s174, %s176
    %p183 = scmp.eq.s32.totalorder %s24, 3
    %p184 = por %p182, %p183
    %p185 = scmp.ne.s32.totalorder %s176, %s177
    %p186 = scmp.eq.s32.totalorder %s24, 0
    %p187 = por %p185, %p186
    %p188 = scmp.ne.s32.totalorder %s176, %s177
    %p189 = scmp.eq.s32.totalorder %s25, 3
    %p190 = por %p188, %p189
    %p192 = scmp.ne.s32.totalorder %s177, %s191
    %p193 = scmp.eq.s32.totalorder %s25, 0
    %p194 = por %p192, %p193
    %s195 = smul.u32 %s26, 2
    %s196 = sadd.s32 %s195, %s27
    %s197 = smul.u32 %s38, 2
    %s198 = sadd.s32 %s197, %s34
    %s199 = ssub.s32 %s196, %s198
    %p200 = scmp.eq.s32.totalorder %s199, 0
    %s202 = sadd.s32 %s201, 1
    %s203 = scalar_select %p200, %s201, %s202
    %p206 = pneg %p200
    %p207 = scmp.eq.s32.totalorder %s19, 3
    %p208 = por %p206, %p207
    %p209 = scmp.ne.s32.totalorder %s201, %s204
    %p210 = scmp.eq.s32.totalorder %s19, 0
    %p211 = por %p209, %p210
    %p212 = scmp.ne.s32.totalorder %s201, %s204
    %p213 = scmp.eq.s32.totalorder %s24, 3
    %p214 = por %p212, %p213
    %p215 = scmp.ne.s32.totalorder %s204, %s205
    %p216 = scmp.eq.s32.totalorder %s24, 0
    %p217 = por %p215, %p216
    %p218 = scmp.ne.s32.totalorder %s204, %s205
    %p219 = scmp.eq.s32.totalorder %s25, 3
    %p220 = por %p218, %p219
    %p222 = scmp.ne.s32.totalorder %s205, %s221
    %p223 = scmp.eq.s32.totalorder %s25, 0
    %p224 = por %p222, %p223
    %s225 = ssub.s32 %s26, %s38
    %p226 = scmp.eq.s32.totalorder %s225, 0
    %s228 = sadd.s32 %s227, 1
    %s229 = scalar_select %p226, %s227, %s228
    %p232 = pneg %p226
    %p233 = scmp.eq.s32.totalorder %s19, 3
    %p234 = por %p232, %p233
    %p235 = scmp.ne.s32.totalorder %s227, %s230
    %p236 = scmp.eq.s32.totalorder %s19, 0
    %p237 = por %p235, %p236
    %p238 = scmp.ne.s32.totalorder %s227, %s230
    %p239 = scmp.eq.s32.totalorder %s24, 3
    %p240 = por %p238, %p239
    %p241 = scmp.ne.s32.totalorder %s230, %s231
    %p242 = scmp.eq.s32.totalorder %s24, 0
    %p243 = por %p241, %p242
    %p244 = scmp.ne.s32.totalorder %s230, %s231
    %p245 = scmp.eq.s32.totalorder %s25, 3
    %p246 = por %p244, %p245
    %p248 = scmp.ne.s32.totalorder %s231, %s247
    %p249 = scmp.eq.s32.totalorder %s25, 0
    %p250 = por %p248, %p249
    %s251 = ssub.s32 %s26, %s38
    %p252 = scmp.eq.s32.totalorder %s251, 0
    %s254 = sadd.s32 %s253, 1
    %s255 = scalar_select %p252, %s253, %s254
    %p258 = pneg %p252
    %p259 = scmp.eq.s32.totalorder %s19, 3
    %p260 = por %p258, %p259
    %p261 = scmp.ne.s32.totalorder %s253, %s256
    %p262 = scmp.eq.s32.totalorder %s19, 0
    %p263 = por %p261, %p262
    %p264 = scmp.ne.s32.totalorder %s253, %s256
    %p265 = scmp.eq.s32.totalorder %s24, 3
    %p266 = por %p264, %p265
    %p267 = scmp.ne.s32.totalorder %s256, %s257
    %p268 = scmp.eq.s32.totalorder %s24, 0
    %p269 = por %p267, %p268
    %p270 = scmp.ne.s32.totalorder %s256, %s257
    %p271 = scmp.eq.s32.totalorder %s25, 3
    %p272 = por %p270, %p271
    %p274 = scmp.ne.s32.totalorder %s257, %s273
    %p275 = scmp.eq.s32.totalorder %s25, 0
    %p276 = por %p274, %p275
    %s277 = ssub.s32 %s26, %s38
    %p278 = scmp.eq.s32.totalorder %s277, 0
    %s280 = sadd.s32 %s279, 1
    %s281 = scalar_select %p278, %s279, %s280
    %p284 = pneg %p278
    %p285 = scmp.eq.s32.totalorder %s19, 3
    %p286 = por %p284, %p285
    %p287 = scmp.ne.s32.totalorder %s279, %s282
    %p288 = scmp.eq.s32.totalorder %s19, 0
    %p289 = por %p287, %p288
    %p290 = scmp.ne.s32.totalorder %s279, %s282
    %p291 = scmp.eq.s32.totalorder %s24, 3
    %p292 = por %p290, %p291
    %p293 = scmp.ne.s32.totalorder %s282, %s283
    %p294 = scmp.eq.s32.totalorder %s24, 0
    %p295 = por %p293, %p294
    %p296 = scmp.ne.s32.totalorder %s282, %s283
    %p297 = scmp.eq.s32.totalorder %s25, 3
    %p298 = por %p296, %p297
    %p300 = scmp.ne.s32.totalorder %s283, %s299
    %p301 = scmp.eq.s32.totalorder %s25, 0
    %p302 = por %p300, %p301
    %p303 = scmp.le.s32.totalorder 1, %s19
    %p304 = scmp.lt.s32.totalorder %s19, 5
    %p305 = pnand %p303, %p304
    %p306 = pneg %p305
    // Predicated region
    $region9: #{dattention_forward.1} parent=5 // pred_check
      _
    $region10: #{dattention_forward.1} parent=5 // pred_check_branch
      %308 = sbr.rel (%p305) target = $region12
    $region11: #{dattention_forward.1} parent=5 // pred_region
      %s309 = ssub.s32 %s19, 1
      // Predicated region
      $region13: #{dattention_forward.1} parent=11 // pred_check
        %p310 = pneg %p82
      $region14: #{dattention_forward.1} parent=11 // pred_check_branch
        %312 = sbr.rel (%p310) target = $region16
      $region15: #{dattention_forward.1} parent=11 // pred_region
        _
      $region16: #{dattention_forward.1} parent=11 // pred_fallthru
        _
      // Predicated region
      $region17: #{dattention_forward.1} parent=11 // pred_check
        %p313 = pneg %p103
      $region18: #{dattention_forward.1} parent=11 // pred_check_branch
        %315 = sbr.rel (%p313) target = $region20
      $region19: #{dattention_forward.1} parent=11 // pred_region
        _
      $region20: #{dattention_forward.1} parent=11 // pred_fallthru
        _
      // Predicated region
      $region21: #{dattention_forward.1} parent=11 // pred_check
        %p316 = pneg %p124
      $region22: #{dattention_forward.1} parent=11 // pred_check_branch
        %318 = sbr.rel (%p316) target = $region24
      $region23: #{dattention_forward.1} parent=11 // pred_region
        _
      $region24: #{dattention_forward.1} parent=11 // pred_fallthru
        _
      // Predicated region
      $region25: #{dattention_forward.1} parent=11 // pred_check
        %p319 = pneg %p145
      $region26: #{dattention_forward.1} parent=11 // pred_check_branch
        %321 = sbr.rel (%p319) target = $region28
      $region27: #{dattention_forward.1} parent=11 // pred_region
        _
      $region28: #{dattention_forward.1} parent=11 // pred_fallthru
        _
      // Predicated region
      $region29: #{dattention_forward.1} parent=11 // pred_check
        %p322 = pneg %p166
      $region30: #{dattention_forward.1} parent=11 // pred_check_branch
        %324 = sbr.rel (%p322) target = $region32
      $region31: #{dattention_forward.1} parent=11 // pred_region
        _
      $region32: #{dattention_forward.1} parent=11 // pred_fallthru
        _
      // Predicated region
      $region33: #{dattention_forward.1} parent=11 // pred_check
        %p325 = pneg %p187
      $region34: #{dattention_forward.1} parent=11 // pred_check_branch
        %327 = sbr.rel (%p325) target = $region36
      $region35: #{dattention_forward.1} parent=11 // pred_region
        _
      $region36: #{dattention_forward.1} parent=11 // pred_fallthru
        _
    $region12: #{dattention_forward.1} parent=5 // pred_fallthru
      _
    %p328 = scmp.lt.s32.totalorder %s19, 4
    // Predicated region
    $region37: #{dattention_forward.1} parent=5 // pred_check
      %p329 = pneg %p328
    $region38: #{dattention_forward.1} parent=5 // pred_check_branch
      %331 = sbr.rel (%p329) target = $region40
    $region39: #{dattention_forward.1} parent=5 // pred_region
      // Predicated region
      $region41: #{dattention_forward.1} parent=39 // pred_check
        %p332 = pneg %p55
      $region42: #{dattention_forward.1} parent=39 // pred_check_branch
        %334 = sbr.rel (%p332) target = $region44
      $region43: #{dattention_forward.1} parent=39 // pred_region
        %s335 = smul.u32 %s26, 2
        %s336 = sadd.s32 %s335, %s27
        %s337 = smul.u32 16, %s336
        %p338 = scmp.lt.s32.totalorder %s337, 63
        %s339 = scalar_select %p338, %s337, 63
        %s340 = smul.addr %s339, 2
        %s341 = smul.addr %s340, 4
        %s342 = scalar_lea.vmem %s0, %s341
        %s343 = smul.u32 %s26, 2
        %s344 = sadd.s32 %s343, %s27
        %s345 = smul.u32 16, %s344
      $region44: #{dattention_forward.1} parent=39 // pred_fallthru
        _
    $region40: #{dattention_forward.1} parent=5 // pred_fallthru
      _
    %p346 = scmp.le.s32.totalorder 1, %s19
    %p347 = scmp.lt.s32.totalorder %s19, 5
    %p348 = pnand %p346, %p347
    %p349 = pneg %p348
    // Predicated region
    $region45: #{dattention_forward.1} parent=5 // pred_check
      _
    $region46: #{dattention_forward.1} parent=5 // pred_check_branch
      %351 = sbr.rel (%p348) target = $region48
    $region47: #{dattention_forward.1} parent=5 // pred_region
      %s352 = ssub.s32 %s19, 1
      %s353 = smul.u32 %s28, 2
      %s354 = sadd.s32 %s353, %s29
      %s355 = smul.u32 16, %s354
      %p356 = scmp.lt.s32.totalorder %s355, 63
      %s357 = scalar_select %p356, %s355, 63
      %s358 = smul.addr %s357, 2
      %s359 = smul.addr %s358, 4
      %s360 = scalar_lea.vmem %s0, %s359
      %p361 = pneg %p61
      %p362 = pneg %p58
      %p363 = pneg %p82
      %p364 = pneg %p79
      %p365 = pneg %p103
      %p366 = pneg %p100
      %p367 = pneg %p124
      %p368 = pneg %p121
      %p369 = pneg %p145
      %p370 = pneg %p142
      %p371 = pneg %p166
      %p372 = pneg %p163
      %p373 = pneg %p187
      %p374 = pneg %p184
      %p375 = pneg %p217
      %p376 = pneg %p214
      %s377 = smul.u32 %s28, 2
      %s378 = sadd.s32 %s377, %s29
      %p379 = scmp.lt.s32.totalorder %s378, 3
      %s380 = scalar_select %p379, %s378, 3
      %s381 = scalar_lea.vmem %s7, %s380
      %p382 = pneg %p243
      %p383 = pneg %p240
      %p384 = scmp.lt.s32.totalorder %s28, 1
      %s385 = scalar_select %p384, %s28, 1
      %s386 = scalar_lea.vmem %s8, %s385
      %p387 = pneg %p269
      %p388 = pneg %p266
      %p389 = scmp.lt.s32.totalorder %s28, 1
      %s390 = scalar_select %p389, %s28, 1
      %s391 = scalar_lea.vmem %s9, %s390
      %p392 = pneg %p295
      %p393 = pneg %p292
      %p394 = scmp.lt.s32.totalorder %s28, 1
      %s395 = scalar_select %p394, %s28, 1
      %s396 = smul.addr %s395, 4
      %s397 = scalar_lea.vmem %s10, %s396
      %s398 = smul.u32 %s28, 2
      %s399 = sadd.s32 %s398, %s29
      %s400 = smul.u32 16, %s399
      %p401 = scmp.lt.s32.totalorder %s400, 63
      %s402 = scalar_select %p401, %s400, 63
      %s403 = smul.addr %s402, 2
      %s404 = smul.addr %s403, 4
      %s405 = scalar_lea.vmem %s0, %s404
      %s406 = smul.u32 %s28, 2
      %s407 = sadd.s32 %s406, %s29
      %s408 = smul.u32 16, %s407
      %s409 = smul.u32 %s28, 2
      %s410 = sadd.s32 %s409, %s29
      %p411 = scmp.lt.s32.totalorder %s410, 3
      %s412 = scalar_select %p411, %s410, 3
      %s413 = scalar_lea.vmem %s7, %s412
      %s414 = smul.u32 %s28, 2
      %s415 = sadd.s32 %s414, %s29
      %p416 = scmp.lt.s32.totalorder %s28, 1
      %s417 = scalar_select %p416, %s28, 1
      %s418 = scalar_lea.vmem %s8, %s417
      %p419 = scmp.lt.s32.totalorder %s28, 1
      %s420 = scalar_select %p419, %s28, 1
      %s421 = scalar_lea.vmem %s9, %s420
      %p422 = scmp.lt.s32.totalorder %s28, 1
      %s423 = scalar_select %p422, %s28, 1
      %s424 = smul.addr %s423, 4
      %s425 = scalar_lea.vmem %s10, %s424
      %p426 = scmp.eq.s32.totalorder %s29, 0
      // Predicated region
      $region49: #{dattention_forward.1} parent=47 // pred_check
        %p427 = pneg %p426
      $region50: #{dattention_forward.1} parent=47 // pred_check_branch
        %429 = sbr.rel (%p427) target = $region52
      $region51: #{dattention_forward.1} parent=47 // pred_region
        %vm430 = vcmask 0
        %431 = vst.msk [vmem:[%s418] sm:$0x1] %vm430, -inf
        %432 = vst.msk [vmem:[%s421] sm:$0x1] %vm430, 0.0
        %v433 = vlaneseq
        %vm434 = vcmp.ge.s32.totalorder %v433, 0
        %vm435 = vcmp.lt.s32.totalorder %v433, 512
        %vm436 = vmand %vm434, %vm435
        %437 = vst.msk [vmem:[%s425] sm:$0xf] %vm436, 0.0
      $region52: #{dattention_forward.1} parent=47 // pred_fallthru
        _
      %v438 = vld [vmem:[%s405] sm:$0xff]
      %v439 = vld [vmem:[%s405 + $0x8] sm:$0xff]
      %v440 = vld [vmem:[%s405 + $0x10] sm:$0xff]
      %v441 = vld [vmem:[%s405 + $0x18] sm:$0xff]
      %v442 = vld [vmem:[%s405 + $0x20] sm:$0xff]
      %v443 = vld [vmem:[%s405 + $0x28] sm:$0xff]
      %v444 = vld [vmem:[%s405 + $0x30] sm:$0xff]
      %v445 = vld [vmem:[%s405 + $0x38] sm:$0xff]
      %v446 = vld [vmem:[%s405 + $0x40] sm:$0xff]
      %v447 = vld [vmem:[%s405 + $0x48] sm:$0xff]
      %v448 = vld [vmem:[%s405 + $0x50] sm:$0xff]
      %v449 = vld [vmem:[%s405 + $0x58] sm:$0xff]
      %v450 = vld [vmem:[%s405 + $0x60] sm:$0xff]
      %v451 = vld [vmem:[%s405 + $0x68] sm:$0xff]
      %v452 = vld [vmem:[%s405 + $0x70] sm:$0xff]
      %v453 = vld [vmem:[%s405 + $0x78] sm:$0xff]
      %v454 = vld [vmem:[%s1] sm:$0xff]
      %v455 = vld [vmem:[%s1 + $0x8] sm:$0xff]
      %v456 = vld [vmem:[%s1 + $0x10] sm:$0xff]
      %v457 = vld [vmem:[%s1 + $0x18] sm:$0xff]
      %v458 = vld [vmem:[%s1 + $0x20] sm:$0xff]
      %v459 = vld [vmem:[%s1 + $0x28] sm:$0xff]
      %v460 = vld [vmem:[%s1 + $0x30] sm:$0xff]
      %v461 = vld [vmem:[%s1 + $0x38] sm:$0xff]
      %v462 = vld [vmem:[%s1 + $0x40] sm:$0xff]
      %v463 = vld [vmem:[%s1 + $0x48] sm:$0xff]
      %v464 = vld [vmem:[%s1 + $0x50] sm:$0xff]
      %v465 = vld [vmem:[%s1 + $0x58] sm:$0xff]
      %v466 = vld [vmem:[%s1 + $0x60] sm:$0xff]
      %v467 = vld [vmem:[%s1 + $0x68] sm:$0xff]
      %v468 = vld [vmem:[%s1 + $0x70] sm:$0xff]
      %v469 = vld [vmem:[%s1 + $0x78] sm:$0xff]
      %v470 = vld [vmem:[%s1 + $0x80] sm:$0xff]
      %v471 = vld [vmem:[%s1 + $0x88] sm:$0xff]
      %v472 = vld [vmem:[%s1 + $0x90] sm:$0xff]
      %v473 = vld [vmem:[%s1 + $0x98] sm:$0xff]
      %v474 = vld [vmem:[%s1 + $0xa0] sm:$0xff]
      %v475 = vld [vmem:[%s1 + $0xa8] sm:$0xff]
      %v476 = vld [vmem:[%s1 + $0xb0] sm:$0xff]
      %v477 = vld [vmem:[%s1 + $0xb8] sm:$0xff]
      %v478 = vld [vmem:[%s1 + $0xc0] sm:$0xff]
      %v479 = vld [vmem:[%s1 + $0xc8] sm:$0xff]
      %v480 = vld [vmem:[%s1 + $0xd0] sm:$0xff]
      %v481 = vld [vmem:[%s1 + $0xd8] sm:$0xff]
      %v482 = vld [vmem:[%s1 + $0xe0] sm:$0xff]
      %v483 = vld [vmem:[%s1 + $0xe8] sm:$0xff]
      %v484 = vld [vmem:[%s1 + $0xf0] sm:$0xff]
      %v485 = vld [vmem:[%s1 + $0xf8] sm:$0xff]
      %v486 = vld [vmem:[%s1 + $0x100] sm:$0xff]
      %v487 = vld [vmem:[%s1 + $0x108] sm:$0xff]
      %v488 = vld [vmem:[%s1 + $0x110] sm:$0xff]
      %v489 = vld [vmem:[%s1 + $0x118] sm:$0xff]
      %v490 = vld [vmem:[%s1 + $0x120] sm:$0xff]
      %v491 = vld [vmem:[%s1 + $0x128] sm:$0xff]
      %v492 = vld [vmem:[%s1 + $0x130] sm:$0xff]
      %v493 = vld [vmem:[%s1 + $0x138] sm:$0xff]
      %v494 = vld [vmem:[%s1 + $0x140] sm:$0xff]
      %v495 = vld [vmem:[%s1 + $0x148] sm:$0xff]
      %v496 = vld [vmem:[%s1 + $0x150] sm:$0xff]
      %v497 = vld [vmem:[%s1 + $0x158] sm:$0xff]
      %v498 = vld [vmem:[%s1 + $0x160] sm:$0xff]
      %v499 = vld [vmem:[%s1 + $0x168] sm:$0xff]
      %v500 = vld [vmem:[%s1 + $0x170] sm:$0xff]
      %v501 = vld [vmem:[%s1 + $0x178] sm:$0xff]
      %v502 = vld [vmem:[%s1 + $0x180] sm:$0xff]
      %v503 = vld [vmem:[%s1 + $0x188] sm:$0xff]
      %v504 = vld [vmem:[%s1 + $0x190] sm:$0xff]
      %v505 = vld [vmem:[%s1 + $0x198] sm:$0xff]
      %v506 = vld [vmem:[%s1 + $0x1a0] sm:$0xff]
      %v507 = vld [vmem:[%s1 + $0x1a8] sm:$0xff]
      %v508 = vld [vmem:[%s1 + $0x1b0] sm:$0xff]
      %v509 = vld [vmem:[%s1 + $0x1b8] sm:$0xff]
      %v510 = vld [vmem:[%s1 + $0x1c0] sm:$0xff]
      %v511 = vld [vmem:[%s1 + $0x1c8] sm:$0xff]
      %v512 = vld [vmem:[%s1 + $0x1d0] sm:$0xff]
      %v513 = vld [vmem:[%s1 + $0x1d8] sm:$0xff]
      %v514 = vld [vmem:[%s1 + $0x1e0] sm:$0xff]
      %v515 = vld [vmem:[%s1 + $0x1e8] sm:$0xff]
      %v516 = vld [vmem:[%s1 + $0x1f0] sm:$0xff]
      %v517 = vld [vmem:[%s1 + $0x1f8] sm:$0xff]
      %v518 = vld [vmem:[%s2] sm:$0xf]
      %v520 = vperm.slane %v518, 0
      %v521 = vperm.slane %v518, 1
      %v522 = vperm.slane %v518, 2
      %v523 = vperm.slane %v518, 3
      %v544 = vunpack.c.l.b16 %v438
      %v545 = vunpack.c.h.b16 %v438
      %v546 = vunpack.c.l.b16 %v439
      %v547 = vunpack.c.h.b16 %v439
      %v548 = vunpack.c.l.b16 %v440
      %v549 = vunpack.c.h.b16 %v440
      %v550 = vunpack.c.l.b16 %v441
      %v551 = vunpack.c.h.b16 %v441
      %v552 = vunpack.c.l.b16 %v442
      %v553 = vunpack.c.h.b16 %v442
      %v554 = vunpack.c.l.b16 %v443
      %v555 = vunpack.c.h.b16 %v443
      %v556 = vunpack.c.l.b16 %v444
      %v557 = vunpack.c.h.b16 %v444
      %v558 = vunpack.c.l.b16 %v445
      %v559 = vunpack.c.h.b16 %v445
      %v560 = vunpack.c.l.b16 %v446
      %v561 = vunpack.c.h.b16 %v446
      %v562 = vunpack.c.l.b16 %v447
      %v563 = vunpack.c.h.b16 %v447
      %v564 = vunpack.c.l.b16 %v448
      %v565 = vunpack.c.h.b16 %v448
      %v566 = vunpack.c.l.b16 %v449
      %v567 = vunpack.c.h.b16 %v449
      %v568 = vunpack.c.l.b16 %v450
      %v569 = vunpack.c.h.b16 %v450
      %v570 = vunpack.c.l.b16 %v451
      %v571 = vunpack.c.h.b16 %v451
      %v572 = vunpack.c.l.b16 %v452
      %v573 = vunpack.c.h.b16 %v452
      %v574 = vunpack.c.l.b16 %v453
      %v575 = vunpack.c.h.b16 %v453
      %v576 = vpack.c.b16 %v546, %v544
      %v577 = vpack.c.b16 %v547, %v545
      %v578 = vpack.c.b16 %v550, %v548
      %v579 = vpack.c.b16 %v551, %v549
      %v580 = vpack.c.b16 %v554, %v552
      %v581 = vpack.c.b16 %v555, %v553
      %v582 = vpack.c.b16 %v558, %v556
      %v583 = vpack.c.b16 %v559, %v557
      %v584 = vpack.c.b16 %v562, %v560
      %v585 = vpack.c.b16 %v563, %v561
      %v586 = vpack.c.b16 %v566, %v564
      %v587 = vpack.c.b16 %v567, %v565
      %v588 = vpack.c.b16 %v570, %v568
      %v589 = vpack.c.b16 %v571, %v569
      %v590 = vpack.c.b16 %v574, %v572
      %v591 = vpack.c.b16 %v575, %v573
      %v672 = vunpack.c.l.b16 %v454
      %v673 = vunpack.c.h.b16 %v454
      %v674 = vunpack.c.l.b16 %v455
      %v675 = vunpack.c.h.b16 %v455
      %v676 = vunpack.c.l.b16 %v456
      %v677 = vunpack.c.h.b16 %v456
      %v678 = vunpack.c.l.b16 %v457
      %v679 = vunpack.c.h.b16 %v457
      %v680 = vunpack.c.l.b16 %v458
      %v681 = vunpack.c.h.b16 %v458
      %v682 = vunpack.c.l.b16 %v459
      %v683 = vunpack.c.h.b16 %v459
      %v684 = vunpack.c.l.b16 %v460
      %v685 = vunpack.c.h.b16 %v460
      %v686 = vunpack.c.l.b16 %v461
      %v687 = vunpack.c.h.b16 %v461
      %v688 = vunpack.c.l.b16 %v462
      %v689 = vunpack.c.h.b16 %v462
      %v690 = vunpack.c.l.b16 %v463
      %v691 = vunpack.c.h.b16 %v463
      %v692 = vunpack.c.l.b16 %v464
      %v693 = vunpack.c.h.b16 %v464
      %v694 = vunpack.c.l.b16 %v465
      %v695 = vunpack.c.h.b16 %v465
      %v696 = vunpack.c.l.b16 %v466
      %v697 = vunpack.c.h.b16 %v466
      %v698 = vunpack.c.l.b16 %v467
      %v699 = vunpack.c.h.b16 %v467
      %v700 = vunpack.c.l.b16 %v468
      %v701 = vunpack.c.h.b16 %v468
      %v702 = vunpack.c.l.b16 %v469
      %v703 = vunpack.c.h.b16 %v469
      %v704 = vunpack.c.l.b16 %v470
      %v705 = vunpack.c.h.b16 %v470
      %v706 = vunpack.c.l.b16 %v471
      %v707 = vunpack.c.h.b16 %v471
      %v708 = vunpack.c.l.b16 %v472
      %v709 = vunpack.c.h.b16 %v472
      %v710 = vunpack.c.l.b16 %v473
      %v711 = vunpack.c.h.b16 %v473
      %v712 = vunpack.c.l.b16 %v474
      %v713 = vunpack.c.h.b16 %v474
      %v714 = vunpack.c.l.b16 %v475
      %v715 = vunpack.c.h.b16 %v475
      %v716 = vunpack.c.l.b16 %v476
      %v717 = vunpack.c.h.b16 %v476
      %v718 = vunpack.c.l.b16 %v477
      %v719 = vunpack.c.h.b16 %v477
      %v720 = vunpack.c.l.b16 %v478
      %v721 = vunpack.c.h.b16 %v478
      %v722 = vunpack.c.l.b16 %v479
      %v723 = vunpack.c.h.b16 %v479
      %v724 = vunpack.c.l.b16 %v480
      %v725 = vunpack.c.h.b16 %v480
      %v726 = vunpack.c.l.b16 %v481
      %v727 = vunpack.c.h.b16 %v481
      %v728 = vunpack.c.l.b16 %v482
      %v729 = vunpack.c.h.b16 %v482
      %v730 = vunpack.c.l.b16 %v483
      %v731 = vunpack.c.h.b16 %v483
      %v732 = vunpack.c.l.b16 %v484
      %v733 = vunpack.c.h.b16 %v484
      %v734 = vunpack.c.l.b16 %v485
      %v735 = vunpack.c.h.b16 %v485
      %v736 = vunpack.c.l.b16 %v486
      %v737 = vunpack.c.h.b16 %v486
      %v738 = vunpack.c.l.b16 %v487
      %v739 = vunpack.c.h.b16 %v487
      %v740 = vunpack.c.l.b16 %v488
      %v741 = vunpack.c.h.b16 %v488
      %v742 = vunpack.c.l.b16 %v489
      %v743 = vunpack.c.h.b16 %v489
      %v744 = vunpack.c.l.b16 %v490
      %v745 = vunpack.c.h.b16 %v490
      %v746 = vunpack.c.l.b16 %v491
      %v747 = vunpack.c.h.b16 %v491
      %v748 = vunpack.c.l.b16 %v492
      %v749 = vunpack.c.h.b16 %v492
      %v750 = vunpack.c.l.b16 %v493
      %v751 = vunpack.c.h.b16 %v493
      %v752 = vunpack.c.l.b16 %v494
      %v753 = vunpack.c.h.b16 %v494
      %v754 = vunpack.c.l.b16 %v495
      %v755 = vunpack.c.h.b16 %v495
      %v756 = vunpack.c.l.b16 %v496
      %v757 = vunpack.c.h.b16 %v496
      %v758 = vunpack.c.l.b16 %v497
      %v759 = vunpack.c.h.b16 %v497
      %v760 = vunpack.c.l.b16 %v498
      %v761 = vunpack.c.h.b16 %v498
      %v762 = vunpack.c.l.b16 %v499
      %v763 = vunpack.c.h.b16 %v499
      %v764 = vunpack.c.l.b16 %v500
      %v765 = vunpack.c.h.b16 %v500
      %v766 = vunpack.c.l.b16 %v501
      %v767 = vunpack.c.h.b16 %v501
      %v768 = vunpack.c.l.b16 %v502
      %v769 = vunpack.c.h.b16 %v502
      %v770 = vunpack.c.l.b16 %v503
      %v771 = vunpack.c.h.b16 %v503
      %v772 = vunpack.c.l.b16 %v504
      %v773 = vunpack.c.h.b16 %v504
      %v774 = vunpack.c.l.b16 %v505
      %v775 = vunpack.c.h.b16 %v505
      %v776 = vunpack.c.l.b16 %v506
      %v777 = vunpack.c.h.b16 %v506
      %v778 = vunpack.c.l.b16 %v507
      %v779 = vunpack.c.h.b16 %v507
      %v780 = vunpack.c.l.b16 %v508
      %v781 = vunpack.c.h.b16 %v508
      %v782 = vunpack.c.l.b16 %v509
      %v783 = vunpack.c.h.b16 %v509
      %v784 = vunpack.c.l.b16 %v510
      %v785 = vunpack.c.h.b16 %v510
      %v786 = vunpack.c.l.b16 %v511
      %v787 = vunpack.c.h.b16 %v511
      %v788 = vunpack.c.l.b16 %v512
      %v789 = vunpack.c.h.b16 %v512
      %v790 = vunpack.c.l.b16 %v513
      %v791 = vunpack.c.h.b16 %v513
      %v792 = vunpack.c.l.b16 %v514
      %v793 = vunpack.c.h.b16 %v514
      %v794 = vunpack.c.l.b16 %v515
      %v795 = vunpack.c.h.b16 %v515
      %v796 = vunpack.c.l.b16 %v516
      %v797 = vunpack.c.h.b16 %v516
      %v798 = vunpack.c.l.b16 %v517
      %v799 = vunpack.c.h.b16 %v517
      %v800 = vpack.c.b16 %v676, %v672
      %v801 = vpack.c.b16 %v677, %v673
      %v802 = vpack.c.b16 %v678, %v674
      %v803 = vpack.c.b16 %v679, %v675
      %v804 = vpack.c.b16 %v684, %v680
      %v805 = vpack.c.b16 %v685, %v681
      %v806 = vpack.c.b16 %v686, %v682
      %v807 = vpack.c.b16 %v687, %v683
      %v808 = vpack.c.b16 %v692, %v688
      %v809 = vpack.c.b16 %v693, %v689
      %v810 = vpack.c.b16 %v694, %v690
      %v811 = vpack.c.b16 %v695, %v691
      %v812 = vpack.c.b16 %v700, %v696
      %v813 = vpack.c.b16 %v701, %v697
      %v814 = vpack.c.b16 %v702, %v698
      %v815 = vpack.c.b16 %v703, %v699
      %v816 = vpack.c.b16 %v708, %v704
      %v817 = vpack.c.b16 %v709, %v705
      %v818 = vpack.c.b16 %v710, %v706
      %v819 = vpack.c.b16 %v711, %v707
      %v820 = vpack.c.b16 %v716, %v712
      %v821 = vpack.c.b16 %v717, %v713
      %v822 = vpack.c.b16 %v718, %v714
      %v823 = vpack.c.b16 %v719, %v715
      %v824 = vpack.c.b16 %v724, %v720
      %v825 = vpack.c.b16 %v725, %v721
      %v826 = vpack.c.b16 %v726, %v722
      %v827 = vpack.c.b16 %v727, %v723
      %v828 = vpack.c.b16 %v732, %v728
      %v829 = vpack.c.b16 %v733, %v729
      %v830 = vpack.c.b16 %v734, %v730
      %v831 = vpack.c.b16 %v735, %v731
      %v832 = vpack.c.b16 %v740, %v736
      %v833 = vpack.c.b16 %v741, %v737
      %v834 = vpack.c.b16 %v742, %v738
      %v835 = vpack.c.b16 %v743, %v739
      %v836 = vpack.c.b16 %v748, %v744
      %v837 = vpack.c.b16 %v749, %v745
      %v838 = vpack.c.b16 %v750, %v746
      %v839 = vpack.c.b16 %v751, %v747
      %v840 = vpack.c.b16 %v756, %v752
      %v841 = vpack.c.b16 %v757, %v753
      %v842 = vpack.c.b16 %v758, %v754
      %v843 = vpack.c.b16 %v759, %v755
      %v844 = vpack.c.b16 %v764, %v760
      %v845 = vpack.c.b16 %v765, %v761
      %v846 = vpack.c.b16 %v766, %v762
      %v847 = vpack.c.b16 %v767, %v763
      %v848 = vpack.c.b16 %v772, %v768
      %v849 = vpack.c.b16 %v773, %v769
      %v850 = vpack.c.b16 %v774, %v770
      %v851 = vpack.c.b16 %v775, %v771
      %v852 = vpack.c.b16 %v780, %v776
      %v853 = vpack.c.b16 %v781, %v777
      %v854 = vpack.c.b16 %v782, %v778
      %v855 = vpack.c.b16 %v783, %v779
      %v856 = vpack.c.b16 %v788, %v784
      %v857 = vpack.c.b16 %v789, %v785
      %v858 = vpack.c.b16 %v790, %v786
      %v859 = vpack.c.b16 %v791, %v787
      %v860 = vpack.c.b16 %v796, %v792
      %v861 = vpack.c.b16 %v797, %v793
      %v862 = vpack.c.b16 %v798, %v794
      %v863 = vpack.c.b16 %v799, %v795
      %928 = vmatpush.bf16.msra.mxu0 %v828
      %929 = vmatpush.bf16.msra.mxu0 %v824
      %930 = vmatpush.bf16.msra.mxu0 %v820
      %931 = vmatpush.bf16.msra.mxu0 %v816
      %932 = vmatpush.bf16.msra.mxu0 %v812
      %933 = vmatpush.bf16.msra.mxu0 %v808
      %934 = vmatpush.bf16.msra.mxu0 %v804
      %935 = vmatpush.bf16.msra.mxu0 %v800
      %936 = vmatmul.bf16.gmra.mxu0 %v576
      %v937 = vpop.f32.mrf.mxu0
      %v938 = vadd.f32 %v520, %v937
      %v939 = vpop.f32.mrf.mxu0
      %v940 = vadd.f32 %v520, %v939
      %941 = vmatmul.bf16.gmra.mxu0 %v578
      %v942 = vpop.f32.mrf.mxu0
      %v943 = vadd.f32 %v520, %v942
      %v944 = vpop.f32.mrf.mxu0
      %v945 = vadd.f32 %v520, %v944
      %946 = vmatmul.bf16.gmra.mxu0 %v580
      %v947 = vpop.f32.mrf.mxu0
      %v948 = vadd.f32 %v520, %v947
      %v949 = vpop.f32.mrf.mxu0
      %v950 = vadd.f32 %v520, %v949
      %951 = vmatmul.bf16.gmra.mxu0 %v582
      %v952 = vpop.f32.mrf.mxu0
      %v953 = vadd.f32 %v520, %v952
      %v954 = vpop.f32.mrf.mxu0
      %v955 = vadd.f32 %v520, %v954
      %956 = vmatmul.bf16.gmra.mxu0 %v584
      %v957 = vpop.f32.mrf.mxu0
      %v958 = vadd.f32 %v520, %v957
      %v959 = vpop.f32.mrf.mxu0
      %v960 = vadd.f32 %v520, %v959
      %961 = vmatmul.bf16.gmra.mxu0 %v586
      %v962 = vpop.f32.mrf.mxu0
      %v963 = vadd.f32 %v520, %v962
      %v964 = vpop.f32.mrf.mxu0
      %v965 = vadd.f32 %v520, %v964
      %966 = vmatmul.bf16.gmra.mxu0 %v588
      %v967 = vpop.f32.mrf.mxu0
      %v968 = vadd.f32 %v520, %v967
      %v969 = vpop.f32.mrf.mxu0
      %v970 = vadd.f32 %v520, %v969
      %971 = vmatmul.bf16.gmra.mxu0 %v590
      %v972 = vpop.f32.mrf.mxu0
      %v973 = vadd.f32 %v520, %v972
      %v974 = vpop.f32.mrf.mxu0
      %v975 = vadd.f32 %v520, %v974
      %976 = vdwg.mxu0
      %977 = vmatpush.bf16.msra.mxu0 %v860
      %978 = vmatpush.bf16.msra.mxu0 %v856
      %979 = vmatpush.bf16.msra.mxu0 %v852
      %980 = vmatpush.bf16.msra.mxu0 %v848
      %981 = vmatpush.bf16.msra.mxu0 %v844
      %982 = vmatpush.bf16.msra.mxu0 %v840
      %983 = vmatpush.bf16.msra.mxu0 %v836
      %984 = vmatpush.bf16.msra.mxu0 %v832
      %985 = vmatmul.bf16.gmra.mxu0 %v577
      %v986 = vpop.f32.mrf.mxu0
      %v987 = vadd.f32 %v938, %v986
      %v988 = vpop.f32.mrf.mxu0
      %v989 = vadd.f32 %v940, %v988
      %990 = vmatmul.bf16.gmra.mxu0 %v579
      %v991 = vpop.f32.mrf.mxu0
      %v992 = vadd.f32 %v943, %v991
      %v993 = vpop.f32.mrf.mxu0
      %v994 = vadd.f32 %v945, %v993
      %995 = vmatmul.bf16.gmra.mxu0 %v581
      %v996 = vpop.f32.mrf.mxu0
      %v997 = vadd.f32 %v948, %v996
      %v998 = vpop.f32.mrf.mxu0
      %v999 = vadd.f32 %v950, %v998
      %1000 = vmatmul.bf16.gmra.mxu0 %v583
      %v1001 = vpop.f32.mrf.mxu0
      %v1002 = vadd.f32 %v953, %v1001
      %v1003 = vpop.f32.mrf.mxu0
      %v1004 = vadd.f32 %v955, %v1003
      %1005 = vmatmul.bf16.gmra.mxu0 %v585
      %v1006 = vpop.f32.mrf.mxu0
      %v1007 = vadd.f32 %v958, %v1006
      %v1008 = vpop.f32.mrf.mxu0
      %v1009 = vadd.f32 %v960, %v1008
      %1010 = vmatmul.bf16.gmra.mxu0 %v587
      %v1011 = vpop.f32.mrf.mxu0
      %v1012 = vadd.f32 %v963, %v1011
      %v1013 = vpop.f32.mrf.mxu0
      %v1014 = vadd.f32 %v965, %v1013
      %1015 = vmatmul.bf16.gmra.mxu0 %v589
      %v1016 = vpop.f32.mrf.mxu0
      %v1017 = vadd.f32 %v968, %v1016
      %v1018 = vpop.f32.mrf.mxu0
      %v1019 = vadd.f32 %v970, %v1018
      %1020 = vmatmul.bf16.gmra.mxu0 %v591
      %v1021 = vpop.f32.mrf.mxu0
      %v1022 = vadd.f32 %v973, %v1021
      %v1023 = vpop.f32.mrf.mxu0
      %v1024 = vadd.f32 %v975, %v1023
      %1025 = vdwg.mxu0
      %1026 = vmatpush.bf16.msra.mxu0 %v829
      %1027 = vmatpush.bf16.msra.mxu0 %v825
      %1028 = vmatpush.bf16.msra.mxu0 %v821
      %1029 = vmatpush.bf16.msra.mxu0 %v817
      %1030 = vmatpush.bf16.msra.mxu0 %v813
      %1031 = vmatpush.bf16.msra.mxu0 %v809
      %1032 = vmatpush.bf16.msra.mxu0 %v805
      %1033 = vmatpush.bf16.msra.mxu0 %v801
      %1034 = vmatmul.bf16.gmra.mxu0 %v576
      %v1035 = vpop.f32.mrf.mxu0
      %v1036 = vadd.f32 %v521, %v1035
      %v1037 = vpop.f32.mrf.mxu0
      %v1038 = vadd.f32 %v521, %v1037
      %1039 = vmatmul.bf16.gmra.mxu0 %v578
      %v1040 = vpop.f32.mrf.mxu0
      %v1041 = vadd.f32 %v521, %v1040
      %v1042 = vpop.f32.mrf.mxu0
      %v1043 = vadd.f32 %v521, %v1042
      %1044 = vmatmul.bf16.gmra.mxu0 %v580
      %v1045 = vpop.f32.mrf.mxu0
      %v1046 = vadd.f32 %v521, %v1045
      %v1047 = vpop.f32.mrf.mxu0
      %v1048 = vadd.f32 %v521, %v1047
      %1049 = vmatmul.bf16.gmra.mxu0 %v582
      %v1050 = vpop.f32.mrf.mxu0
      %v1051 = vadd.f32 %v521, %v1050
      %v1052 = vpop.f32.mrf.mxu0
      %v1053 = vadd.f32 %v521, %v1052
      %1054 = vmatmul.bf16.gmra.mxu0 %v584
      %v1055 = vpop.f32.mrf.mxu0
      %v1056 = vadd.f32 %v521, %v1055
      %v1057 = vpop.f32.mrf.mxu0
      %v1058 = vadd.f32 %v521, %v1057
      %1059 = vmatmul.bf16.gmra.mxu0 %v586
      %v1060 = vpop.f32.mrf.mxu0
      %v1061 = vadd.f32 %v521, %v1060
      %v1062 = vpop.f32.mrf.mxu0
      %v1063 = vadd.f32 %v521, %v1062
      %1064 = vmatmul.bf16.gmra.mxu0 %v588
      %v1065 = vpop.f32.mrf.mxu0
      %v1066 = vadd.f32 %v521, %v1065
      %v1067 = vpop.f32.mrf.mxu0
      %v1068 = vadd.f32 %v521, %v1067
      %1069 = vmatmul.bf16.gmra.mxu0 %v590
      %v1070 = vpop.f32.mrf.mxu0
      %v1071 = vadd.f32 %v521, %v1070
      %v1072 = vpop.f32.mrf.mxu0
      %v1073 = vadd.f32 %v521, %v1072
      %1074 = vdwg.mxu0
      %1075 = vmatpush.bf16.msra.mxu0 %v861
      %1076 = vmatpush.bf16.msra.mxu0 %v857
      %1077 = vmatpush.bf16.msra.mxu0 %v853
      %1078 = vmatpush.bf16.msra.mxu0 %v849
      %1079 = vmatpush.bf16.msra.mxu0 %v845
      %1080 = vmatpush.bf16.msra.mxu0 %v841
      %1081 = vmatpush.bf16.msra.mxu0 %v837
      %1082 = vmatpush.bf16.msra.mxu0 %v833
      %1083 = vmatmul.bf16.gmra.mxu0 %v577
      %v1084 = vpop.f32.mrf.mxu0
      %v1085 = vadd.f32 %v1036, %v1084
      %v1086 = vpop.f32.mrf.mxu0
      %v1087 = vadd.f32 %v1038, %v1086
      %1088 = vmatmul.bf16.gmra.mxu0 %v579
      %v1089 = vpop.f32.mrf.mxu0
      %v1090 = vadd.f32 %v1041, %v1089
      %v1091 = vpop.f32.mrf.mxu0
      %v1092 = vadd.f32 %v1043, %v1091
      %1093 = vmatmul.bf16.gmra.mxu0 %v581
      %v1094 = vpop.f32.mrf.mxu0
      %v1095 = vadd.f32 %v1046, %v1094
      %v1096 = vpop.f32.mrf.mxu0
      %v1097 = vadd.f32 %v1048, %v1096
      %1098 = vmatmul.bf16.gmra.mxu0 %v583
      %v1099 = vpop.f32.mrf.mxu0
      %v1100 = vadd.f32 %v1051, %v1099
      %v1101 = vpop.f32.mrf.mxu0
      %v1102 = vadd.f32 %v1053, %v1101
      %1103 = vmatmul.bf16.gmra.mxu0 %v585
      %v1104 = vpop.f32.mrf.mxu0
      %v1105 = vadd.f32 %v1056, %v1104
      %v1106 = vpop.f32.mrf.mxu0
      %v1107 = vadd.f32 %v1058, %v1106
      %1108 = vmatmul.bf16.gmra.mxu0 %v587
      %v1109 = vpop.f32.mrf.mxu0
      %v1110 = vadd.f32 %v1061, %v1109
      %v1111 = vpop.f32.mrf.mxu0
      %v1112 = vadd.f32 %v1063, %v1111
      %1113 = vmatmul.bf16.gmra.mxu0 %v589
      %v1114 = vpop.f32.mrf.mxu0
      %v1115 = vadd.f32 %v1066, %v1114
      %v1116 = vpop.f32.mrf.mxu0
      %v1117 = vadd.f32 %v1068, %v1116
      %1118 = vmatmul.bf16.gmra.mxu0 %v591
      %v1119 = vpop.f32.mrf.mxu0
      %v1120 = vadd.f32 %v1071, %v1119
      %v1121 = vpop.f32.mrf.mxu0
      %v1122 = vadd.f32 %v1073, %v1121
      %1123 = vdwg.mxu0
      %1124 = vmatpush.bf16.msra.mxu0 %v830
      %1125 = vmatpush.bf16.msra.mxu0 %v826
      %1126 = vmatpush.bf16.msra.mxu0 %v822
      %1127 = vmatpush.bf16.msra.mxu0 %v818
      %1128 = vmatpush.bf16.msra.mxu0 %v814
      %1129 = vmatpush.bf16.msra.mxu0 %v810
      %1130 = vmatpush.bf16.msra.mxu0 %v806
      %1131 = vmatpush.bf16.msra.mxu0 %v802
      %1132 = vmatmul.bf16.gmra.mxu0 %v576
      %v1133 = vpop.f32.mrf.mxu0
      %v1134 = vadd.f32 %v522, %v1133
      %v1135 = vpop.f32.mrf.mxu0
      %v1136 = vadd.f32 %v522, %v1135
      %1137 = vmatmul.bf16.gmra.mxu0 %v578
      %v1138 = vpop.f32.mrf.mxu0
      %v1139 = vadd.f32 %v522, %v1138
      %v1140 = vpop.f32.mrf.mxu0
      %v1141 = vadd.f32 %v522, %v1140
      %1142 = vmatmul.bf16.gmra.mxu0 %v580
      %v1143 = vpop.f32.mrf.mxu0
      %v1144 = vadd.f32 %v522, %v1143
      %v1145 = vpop.f32.mrf.mxu0
      %v1146 = vadd.f32 %v522, %v1145
      %1147 = vmatmul.bf16.gmra.mxu0 %v582
      %v1148 = vpop.f32.mrf.mxu0
      %v1149 = vadd.f32 %v522, %v1148
      %v1150 = vpop.f32.mrf.mxu0
      %v1151 = vadd.f32 %v522, %v1150
      %1152 = vmatmul.bf16.gmra.mxu0 %v584
      %v1153 = vpop.f32.mrf.mxu0
      %v1154 = vadd.f32 %v522, %v1153
      %v1155 = vpop.f32.mrf.mxu0
      %v1156 = vadd.f32 %v522, %v1155
      %1157 = vmatmul.bf16.gmra.mxu0 %v586
      %v1158 = vpop.f32.mrf.mxu0
      %v1159 = vadd.f32 %v522, %v1158
      %v1160 = vpop.f32.mrf.mxu0
      %v1161 = vadd.f32 %v522, %v1160
      %1162 = vmatmul.bf16.gmra.mxu0 %v588
      %v1163 = vpop.f32.mrf.mxu0
      %v1164 = vadd.f32 %v522, %v1163
      %v1165 = vpop.f32.mrf.mxu0
      %v1166 = vadd.f32 %v522, %v1165
      %1167 = vmatmul.bf16.gmra.mxu0 %v590
      %v1168 = vpop.f32.mrf.mxu0
      %v1169 = vadd.f32 %v522, %v1168
      %v1170 = vpop.f32.mrf.mxu0
      %v1171 = vadd.f32 %v522, %v1170
      %1172 = vdwg.mxu0
      %1173 = vmatpush.bf16.msra.mxu0 %v862
      %1174 = vmatpush.bf16.msra.mxu0 %v858
      %1175 = vmatpush.bf16.msra.mxu0 %v854
      %1176 = vmatpush.bf16.msra.mxu0 %v850
      %1177 = vmatpush.bf16.msra.mxu0 %v846
      %1178 = vmatpush.bf16.msra.mxu0 %v842
      %1179 = vmatpush.bf16.msra.mxu0 %v838
      %1180 = vmatpush.bf16.msra.mxu0 %v834
      %1181 = vmatmul.bf16.gmra.mxu0 %v577
      %v1182 = vpop.f32.mrf.mxu0
      %v1183 = vadd.f32 %v1134, %v1182
      %v1184 = vpop.f32.mrf.mxu0
      %v1185 = vadd.f32 %v1136, %v1184
      %1186 = vmatmul.bf16.gmra.mxu0 %v579
      %v1187 = vpop.f32.mrf.mxu0
      %v1188 = vadd.f32 %v1139, %v1187
      %v1189 = vpop.f32.mrf.mxu0
      %v1190 = vadd.f32 %v1141, %v1189
      %1191 = vmatmul.bf16.gmra.mxu0 %v581
      %v1192 = vpop.f32.mrf.mxu0
      %v1193 = vadd.f32 %v1144, %v1192
      %v1194 = vpop.f32.mrf.mxu0
      %v1195 = vadd.f32 %v1146, %v1194
      %1196 = vmatmul.bf16.gmra.mxu0 %v583
      %v1197 = vpop.f32.mrf.mxu0
      %v1198 = vadd.f32 %v1149, %v1197
      %v1199 = vpop.f32.mrf.mxu0
      %v1200 = vadd.f32 %v1151, %v1199
      %1201 = vmatmul.bf16.gmra.mxu0 %v585
      %v1202 = vpop.f32.mrf.mxu0
      %v1203 = vadd.f32 %v1154, %v1202
      %v1204 = vpop.f32.mrf.mxu0
      %v1205 = vadd.f32 %v1156, %v1204
      %1206 = vmatmul.bf16.gmra.mxu0 %v587
      %v1207 = vpop.f32.mrf.mxu0
      %v1208 = vadd.f32 %v1159, %v1207
      %v1209 = vpop.f32.mrf.mxu0
      %v1210 = vadd.f32 %v1161, %v1209
      %1211 = vmatmul.bf16.gmra.mxu0 %v589
      %v1212 = vpop.f32.mrf.mxu0
      %v1213 = vadd.f32 %v1164, %v1212
      %v1214 = vpop.f32.mrf.mxu0
      %v1215 = vadd.f32 %v1166, %v1214
      %1216 = vmatmul.bf16.gmra.mxu0 %v591
      %v1217 = vpop.f32.mrf.mxu0
      %v1218 = vadd.f32 %v1169, %v1217
      %v1219 = vpop.f32.mrf.mxu0
      %v1220 = vadd.f32 %v1171, %v1219
      %1221 = vdwg.mxu0
      %1222 = vmatpush.bf16.msra.mxu0 %v831
      %1223 = vmatpush.bf16.msra.mxu0 %v827
      %1224 = vmatpush.bf16.msra.mxu0 %v823
      %1225 = vmatpush.bf16.msra.mxu0 %v819
      %1226 = vmatpush.bf16.msra.mxu0 %v815
      %1227 = vmatpush.bf16.msra.mxu0 %v811
      %1228 = vmatpush.bf16.msra.mxu0 %v807
      %1229 = vmatpush.bf16.msra.mxu0 %v803
      %1230 = vmatmul.bf16.gmra.mxu0 %v576
      %v1231 = vpop.f32.mrf.mxu0
      %v1232 = vadd.f32 %v523, %v1231
      %v1233 = vpop.f32.mrf.mxu0
      %v1234 = vadd.f32 %v523, %v1233
      %1235 = vmatmul.bf16.gmra.mxu0 %v578
      %v1236 = vpop.f32.mrf.mxu0
      %v1237 = vadd.f32 %v523, %v1236
      %v1238 = vpop.f32.mrf.mxu0
      %v1239 = vadd.f32 %v523, %v1238
      %1240 = vmatmul.bf16.gmra.mxu0 %v580
      %v1241 = vpop.f32.mrf.mxu0
      %v1242 = vadd.f32 %v523, %v1241
      %v1243 = vpop.f32.mrf.mxu0
      %v1244 = vadd.f32 %v523, %v1243
      %1245 = vmatmul.bf16.gmra.mxu0 %v582
      %v1246 = vpop.f32.mrf.mxu0
      %v1247 = vadd.f32 %v523, %v1246
      %v1248 = vpop.f32.mrf.mxu0
      %v1249 = vadd.f32 %v523, %v1248
      %1250 = vmatmul.bf16.gmra.mxu0 %v584
      %v1251 = vpop.f32.mrf.mxu0
      %v1252 = vadd.f32 %v523, %v1251
      %v1253 = vpop.f32.mrf.mxu0
      %v1254 = vadd.f32 %v523, %v1253
      %1255 = vmatmul.bf16.gmra.mxu0 %v586
      %v1256 = vpop.f32.mrf.mxu0
      %v1257 = vadd.f32 %v523, %v1256
      %v1258 = vpop.f32.mrf.mxu0
      %v1259 = vadd.f32 %v523, %v1258
      %1260 = vmatmul.bf16.gmra.mxu0 %v588
      %v1261 = vpop.f32.mrf.mxu0
      %v1262 = vadd.f32 %v523, %v1261
      %v1263 = vpop.f32.mrf.mxu0
      %v1264 = vadd.f32 %v523, %v1263
      %1265 = vmatmul.bf16.gmra.mxu0 %v590
      %v1266 = vpop.f32.mrf.mxu0
      %v1267 = vadd.f32 %v523, %v1266
      %v1268 = vpop.f32.mrf.mxu0
      %v1269 = vadd.f32 %v523, %v1268
      %1270 = vdwg.mxu0
      %1271 = vmatpush.bf16.msra.mxu0 %v863
      %1272 = vmatpush.bf16.msra.mxu0 %v859
      %1273 = vmatpush.bf16.msra.mxu0 %v855
      %1274 = vmatpush.bf16.msra.mxu0 %v851
      %1275 = vmatpush.bf16.msra.mxu0 %v847
      %1276 = vmatpush.bf16.msra.mxu0 %v843
      %1277 = vmatpush.bf16.msra.mxu0 %v839
      %1278 = vmatpush.bf16.msra.mxu0 %v835
      %1279 = vmatmul.bf16.gmra.mxu0 %v577
      %v1280 = vpop.f32.mrf.mxu0
      %v1281 = vadd.f32 %v1232, %v1280
      %v1282 = vpop.f32.mrf.mxu0
      %v1283 = vadd.f32 %v1234, %v1282
      %1284 = vmatmul.bf16.gmra.mxu0 %v579
      %v1285 = vpop.f32.mrf.mxu0
      %v1286 = vadd.f32 %v1237, %v1285
      %v1287 = vpop.f32.mrf.mxu0
      %v1288 = vadd.f32 %v1239, %v1287
      %1289 = vmatmul.bf16.gmra.mxu0 %v581
      %v1290 = vpop.f32.mrf.mxu0
      %v1291 = vadd.f32 %v1242, %v1290
      %v1292 = vpop.f32.mrf.mxu0
      %v1293 = vadd.f32 %v1244, %v1292
      %1294 = vmatmul.bf16.gmra.mxu0 %v583
      %v1295 = vpop.f32.mrf.mxu0
      %v1296 = vadd.f32 %v1247, %v1295
      %v1297 = vpop.f32.mrf.mxu0
      %v1298 = vadd.f32 %v1249, %v1297
      %1299 = vmatmul.bf16.gmra.mxu0 %v585
      %v1300 = vpop.f32.mrf.mxu0
      %v1301 = vadd.f32 %v1252, %v1300
      %v1302 = vpop.f32.mrf.mxu0
      %v1303 = vadd.f32 %v1254, %v1302
      %1304 = vmatmul.bf16.gmra.mxu0 %v587
      %v1305 = vpop.f32.mrf.mxu0
      %v1306 = vadd.f32 %v1257, %v1305
      %v1307 = vpop.f32.mrf.mxu0
      %v1308 = vadd.f32 %v1259, %v1307
      %1309 = vmatmul.bf16.gmra.mxu0 %v589
      %v1310 = vpop.f32.mrf.mxu0
      %v1311 = vadd.f32 %v1262, %v1310
      %v1312 = vpop.f32.mrf.mxu0
      %v1313 = vadd.f32 %v1264, %v1312
      %1314 = vmatmul.bf16.gmra.mxu0 %v591
      %v1315 = vpop.f32.mrf.mxu0
      %v1316 = vadd.f32 %v1267, %v1315
      %v1317 = vpop.f32.mrf.mxu0
      %v1318 = vadd.f32 %v1269, %v1317
      %1319 = vdwg.mxu0
      %v1320 = vmax.f32 %v987, 0.0
      %v1321 = vmax.f32 %v1085, 0.0
      %v1322 = vmax.f32 %v1183, 0.0
      %v1323 = vmax.f32 %v1281, 0.0
      %v1324 = vmax.f32 %v989, 0.0
      %v1325 = vmax.f32 %v1087, 0.0
      %v1326 = vmax.f32 %v1185, 0.0
      %v1327 = vmax.f32 %v1283, 0.0
      %v1328 = vmax.f32 %v992, 0.0
      %v1329 = vmax.f32 %v1090, 0.0
      %v1330 = vmax.f32 %v1188, 0.0
      %v1331 = vmax.f32 %v1286, 0.0
      %v1332 = vmax.f32 %v994, 0.0
      %v1333 = vmax.f32 %v1092, 0.0
      %v1334 = vmax.f32 %v1190, 0.0
      %v1335 = vmax.f32 %v1288, 0.0
      %v1336 = vmax.f32 %v997, 0.0
      %v1337 = vmax.f32 %v1095, 0.0
      %v1338 = vmax.f32 %v1193, 0.0
      %v1339 = vmax.f32 %v1291, 0.0
      %v1340 = vmax.f32 %v999, 0.0
      %v1341 = vmax.f32 %v1097, 0.0
      %v1342 = vmax.f32 %v1195, 0.0
      %v1343 = vmax.f32 %v1293, 0.0
      %v1344 = vmax.f32 %v1002, 0.0
      %v1345 = vmax.f32 %v1100, 0.0
      %v1346 = vmax.f32 %v1198, 0.0
      %v1347 = vmax.f32 %v1296, 0.0
      %v1348 = vmax.f32 %v1004, 0.0
      %v1349 = vmax.f32 %v1102, 0.0
      %v1350 = vmax.f32 %v1200, 0.0
      %v1351 = vmax.f32 %v1298, 0.0
      %v1352 = vmax.f32 %v1007, 0.0
      %v1353 = vmax.f32 %v1105, 0.0
      %v1354 = vmax.f32 %v1203, 0.0
      %v1355 = vmax.f32 %v1301, 0.0
      %v1356 = vmax.f32 %v1009, 0.0
      %v1357 = vmax.f32 %v1107, 0.0
      %v1358 = vmax.f32 %v1205, 0.0
      %v1359 = vmax.f32 %v1303, 0.0
      %v1360 = vmax.f32 %v1012, 0.0
      %v1361 = vmax.f32 %v1110, 0.0
      %v1362 = vmax.f32 %v1208, 0.0
      %v1363 = vmax.f32 %v1306, 0.0
      %v1364 = vmax.f32 %v1014, 0.0
      %v1365 = vmax.f32 %v1112, 0.0
      %v1366 = vmax.f32 %v1210, 0.0
      %v1367 = vmax.f32 %v1308, 0.0
      %v1368 = vmax.f32 %v1017, 0.0
      %v1369 = vmax.f32 %v1115, 0.0
      %v1370 = vmax.f32 %v1213, 0.0
      %v1371 = vmax.f32 %v1311, 0.0
      %v1372 = vmax.f32 %v1019, 0.0
      %v1373 = vmax.f32 %v1117, 0.0
      %v1374 = vmax.f32 %v1215, 0.0
      %v1375 = vmax.f32 %v1313, 0.0
      %v1376 = vmax.f32 %v1022, 0.0
      %v1377 = vmax.f32 %v1120, 0.0
      %v1378 = vmax.f32 %v1218, 0.0
      %v1379 = vmax.f32 %v1316, 0.0
      %v1380 = vmax.f32 %v1024, 0.0
      %v1381 = vmax.f32 %v1122, 0.0
      %v1382 = vmax.f32 %v1220, 0.0
      %v1383 = vmax.f32 %v1318, 0.0
      %v1384 = vpack.c.bf16 %v1324, %v1320
      %v1385 = vpack.c.bf16 %v1325, %v1321
      %v1386 = vpack.c.bf16 %v1326, %v1322
      %v1387 = vpack.c.bf16 %v1327, %v1323
      %v1388 = vpack.c.bf16 %v1332, %v1328
      %v1389 = vpack.c.bf16 %v1333, %v1329
      %v1390 = vpack.c.bf16 %v1334, %v1330
      %v1391 = vpack.c.bf16 %v1335, %v1331
      %v1392 = vpack.c.bf16 %v1340, %v1336
      %v1393 = vpack.c.bf16 %v1341, %v1337
      %v1394 = vpack.c.bf16 %v1342, %v1338
      %v1395 = vpack.c.bf16 %v1343, %v1339
      %v1396 = vpack.c.bf16 %v1348, %v1344
      %v1397 = vpack.c.bf16 %v1349, %v1345
      %v1398 = vpack.c.bf16 %v1350, %v1346
      %v1399 = vpack.c.bf16 %v1351, %v1347
      %v1400 = vpack.c.bf16 %v1356, %v1352
      %v1401 = vpack.c.bf16 %v1357, %v1353
      %v1402 = vpack.c.bf16 %v1358, %v1354
      %v1403 = vpack.c.bf16 %v1359, %v1355
      %v1404 = vpack.c.bf16 %v1364, %v1360
      %v1405 = vpack.c.bf16 %v1365, %v1361
      %v1406 = vpack.c.bf16 %v1366, %v1362
      %v1407 = vpack.c.bf16 %v1367, %v1363
      %v1408 = vpack.c.bf16 %v1372, %v1368
      %v1409 = vpack.c.bf16 %v1373, %v1369
      %v1410 = vpack.c.bf16 %v1374, %v1370
      %v1411 = vpack.c.bf16 %v1375, %v1371
      %v1412 = vpack.c.bf16 %v1380, %v1376
      %v1413 = vpack.c.bf16 %v1381, %v1377
      %v1414 = vpack.c.bf16 %v1382, %v1378
      %v1415 = vpack.c.bf16 %v1383, %v1379
      %v1416 = vld [vmem:[%s3] sm:$0xf]
      %v1417 = vld [vmem:[%s3 + $0x4] sm:$0xf]
      %v1418 = vld [vmem:[%s3 + $0x8] sm:$0xf]
      %v1419 = vld [vmem:[%s3 + $0xc] sm:$0xf]
      %v1420 = vld [vmem:[%s3 + $0x10] sm:$0xf]
      %v1421 = vld [vmem:[%s3 + $0x14] sm:$0xf]
      %v1422 = vld [vmem:[%s3 + $0x18] sm:$0xf]
      %v1423 = vld [vmem:[%s3 + $0x1c] sm:$0xf]
      %v1424 = vld [vmem:[%s3 + $0x20] sm:$0xf]
      %v1425 = vld [vmem:[%s3 + $0x24] sm:$0xf]
      %v1426 = vld [vmem:[%s3 + $0x28] sm:$0xf]
      %v1427 = vld [vmem:[%s3 + $0x2c] sm:$0xf]
      %v1428 = vld [vmem:[%s3 + $0x30] sm:$0xf]
      %v1429 = vld [vmem:[%s3 + $0x34] sm:$0xf]
      %v1430 = vld [vmem:[%s3 + $0x38] sm:$0xf]
      %v1431 = vld [vmem:[%s3 + $0x3c] sm:$0xf]
      %v1432 = vld [vmem:[%s3 + $0x40] sm:$0xf]
      %v1433 = vld [vmem:[%s3 + $0x44] sm:$0xf]
      %v1434 = vld [vmem:[%s3 + $0x48] sm:$0xf]
      %v1435 = vld [vmem:[%s3 + $0x4c] sm:$0xf]
      %v1436 = vld [vmem:[%s3 + $0x50] sm:$0xf]
      %v1437 = vld [vmem:[%s3 + $0x54] sm:$0xf]
      %v1438 = vld [vmem:[%s3 + $0x58] sm:$0xf]
      %v1439 = vld [vmem:[%s3 + $0x5c] sm:$0xf]
      %v1440 = vld [vmem:[%s3 + $0x60] sm:$0xf]
      %v1441 = vld [vmem:[%s3 + $0x64] sm:$0xf]
      %v1442 = vld [vmem:[%s3 + $0x68] sm:$0xf]
      %v1443 = vld [vmem:[%s3 + $0x6c] sm:$0xf]
      %v1444 = vld [vmem:[%s3 + $0x70] sm:$0xf]
      %v1445 = vld [vmem:[%s3 + $0x74] sm:$0xf]
      %v1446 = vld [vmem:[%s3 + $0x78] sm:$0xf]
      %v1447 = vld [vmem:[%s3 + $0x7c] sm:$0xf]
      %v1448 = vld [vmem:[%s3 + $0x80] sm:$0xf]
      %v1449 = vld [vmem:[%s3 + $0x84] sm:$0xf]
      %v1450 = vld [vmem:[%s3 + $0x88] sm:$0xf]
      %v1451 = vld [vmem:[%s3 + $0x8c] sm:$0xf]
      %v1452 = vld [vmem:[%s3 + $0x90] sm:$0xf]
      %v1453 = vld [vmem:[%s3 + $0x94] sm:$0xf]
      %v1454 = vld [vmem:[%s3 + $0x98] sm:$0xf]
      %v1455 = vld [vmem:[%s3 + $0x9c] sm:$0xf]
      %v1456 = vld [vmem:[%s3 + $0xa0] sm:$0xf]
      %v1457 = vld [vmem:[%s3 + $0xa4] sm:$0xf]
      %v1458 = vld [vmem:[%s3 + $0xa8] sm:$0xf]
      %v1459 = vld [vmem:[%s3 + $0xac] sm:$0xf]
      %v1460 = vld [vmem:[%s3 + $0xb0] sm:$0xf]
      %v1461 = vld [vmem:[%s3 + $0xb4] sm:$0xf]
      %v1462 = vld [vmem:[%s3 + $0xb8] sm:$0xf]
      %v1463 = vld [vmem:[%s3 + $0xbc] sm:$0xf]
      %v1464 = vld [vmem:[%s3 + $0xc0] sm:$0xf]
      %v1465 = vld [vmem:[%s3 + $0xc4] sm:$0xf]
      %v1466 = vld [vmem:[%s3 + $0xc8] sm:$0xf]
      %v1467 = vld [vmem:[%s3 + $0xcc] sm:$0xf]
      %v1468 = vld [vmem:[%s3 + $0xd0] sm:$0xf]
      %v1469 = vld [vmem:[%s3 + $0xd4] sm:$0xf]
      %v1470 = vld [vmem:[%s3 + $0xd8] sm:$0xf]
      %v1471 = vld [vmem:[%s3 + $0xdc] sm:$0xf]
      %v1472 = vld [vmem:[%s3 + $0xe0] sm:$0xf]
      %v1473 = vld [vmem:[%s3 + $0xe4] sm:$0xf]
      %v1474 = vld [vmem:[%s3 + $0xe8] sm:$0xf]
      %v1475 = vld [vmem:[%s3 + $0xec] sm:$0xf]
      %v1476 = vld [vmem:[%s3 + $0xf0] sm:$0xf]
      %v1477 = vld [vmem:[%s3 + $0xf4] sm:$0xf]
      %v1478 = vld [vmem:[%s3 + $0xf8] sm:$0xf]
      %v1479 = vld [vmem:[%s3 + $0xfc] sm:$0xf]
      %v1480 = vld [vmem:[%s4] sm:$0x1]
      %v1482 = vperm.slane %v1480, 0
      %v1548 = vunpack.c.l.b16 %v1416
      %v1549 = vunpack.c.l.b16 %v1417
      %v1550 = vunpack.c.l.b16 %v1418
      %v1551 = vunpack.c.l.b16 %v1419
      %v1552 = vunpack.c.l.b16 %v1420
      %v1553 = vunpack.c.l.b16 %v1421
      %v1554 = vunpack.c.l.b16 %v1422
      %v1555 = vunpack.c.l.b16 %v1423
      %v1556 = vunpack.c.l.b16 %v1424
      %v1557 = vunpack.c.l.b16 %v1425
      %v1558 = vunpack.c.l.b16 %v1426
      %v1559 = vunpack.c.l.b16 %v1427
      %v1560 = vunpack.c.l.b16 %v1428
      %v1561 = vunpack.c.l.b16 %v1429
      %v1562 = vunpack.c.l.b16 %v1430
      %v1563 = vunpack.c.l.b16 %v1431
      %v1564 = vunpack.c.l.b16 %v1432
      %v1565 = vunpack.c.l.b16 %v1433
      %v1566 = vunpack.c.l.b16 %v1434
      %v1567 = vunpack.c.l.b16 %v1435
      %v1568 = vunpack.c.l.b16 %v1436
      %v1569 = vunpack.c.l.b16 %v1437
      %v1570 = vunpack.c.l.b16 %v1438
      %v1571 = vunpack.c.l.b16 %v1439
      %v1572 = vunpack.c.l.b16 %v1440
      %v1573 = vunpack.c.l.b16 %v1441
      %v1574 = vunpack.c.l.b16 %v1442
      %v1575 = vunpack.c.l.b16 %v1443
      %v1576 = vunpack.c.l.b16 %v1444
      %v1577 = vunpack.c.l.b16 %v1445
      %v1578 = vunpack.c.l.b16 %v1446
      %v1579 = vunpack.c.l.b16 %v1447
      %v1580 = vunpack.c.l.b16 %v1448
      %v1581 = vunpack.c.l.b16 %v1449
      %v1582 = vunpack.c.l.b16 %v1450
      %v1583 = vunpack.c.l.b16 %v1451
      %v1584 = vunpack.c.l.b16 %v1452
      %v1585 = vunpack.c.l.b16 %v1453
      %v1586 = vunpack.c.l.b16 %v1454
      %v1587 = vunpack.c.l.b16 %v1455
      %v1588 = vunpack.c.l.b16 %v1456
      %v1589 = vunpack.c.l.b16 %v1457
      %v1590 = vunpack.c.l.b16 %v1458
      %v1591 = vunpack.c.l.b16 %v1459
      %v1592 = vunpack.c.l.b16 %v1460
      %v1593 = vunpack.c.l.b16 %v1461
      %v1594 = vunpack.c.l.b16 %v1462
      %v1595 = vunpack.c.l.b16 %v1463
      %v1596 = vunpack.c.l.b16 %v1464
      %v1597 = vunpack.c.l.b16 %v1465
      %v1598 = vunpack.c.l.b16 %v1466
      %v1599 = vunpack.c.l.b16 %v1467
      %v1600 = vunpack.c.l.b16 %v1468
      %v1601 = vunpack.c.l.b16 %v1469
      %v1602 = vunpack.c.l.b16 %v1470
      %v1603 = vunpack.c.l.b16 %v1471
      %v1604 = vunpack.c.l.b16 %v1472
      %v1605 = vunpack.c.l.b16 %v1473
      %v1606 = vunpack.c.l.b16 %v1474
      %v1607 = vunpack.c.l.b16 %v1475
      %v1608 = vunpack.c.l.b16 %v1476
      %v1609 = vunpack.c.l.b16 %v1477
      %v1610 = vunpack.c.l.b16 %v1478
      %v1611 = vunpack.c.l.b16 %v1479
      %v1612 = vpack.c.b16 %v1549, %v1548
      %v1613 = vpack.c.b16 %v1551, %v1550
      %v1614 = vpack.c.b16 %v1553, %v1552
      %v1615 = vpack.c.b16 %v1555, %v1554
      %v1616 = vpack.c.b16 %v1557, %v1556
      %v1617 = vpack.c.b16 %v1559, %v1558
      %v1618 = vpack.c.b16 %v1561, %v1560
      %v1619 = vpack.c.b16 %v1563, %v1562
      %v1620 = vpack.c.b16 %v1565, %v1564
      %v1621 = vpack.c.b16 %v1567, %v1566
      %v1622 = vpack.c.b16 %v1569, %v1568
      %v1623 = vpack.c.b16 %v1571, %v1570
      %v1624 = vpack.c.b16 %v1573, %v1572
      %v1625 = vpack.c.b16 %v1575, %v1574
      %v1626 = vpack.c.b16 %v1577, %v1576
      %v1627 = vpack.c.b16 %v1579, %v1578
      %v1628 = vpack.c.b16 %v1581, %v1580
      %v1629 = vpack.c.b16 %v1583, %v1582
      %v1630 = vpack.c.b16 %v1585, %v1584
      %v1631 = vpack.c.b16 %v1587, %v1586
      %v1632 = vpack.c.b16 %v1589, %v1588
      %v1633 = vpack.c.b16 %v1591, %v1590
      %v1634 = vpack.c.b16 %v1593, %v1592
      %v1635 = vpack.c.b16 %v1595, %v1594
      %v1636 = vpack.c.b16 %v1597, %v1596
      %v1637 = vpack.c.b16 %v1599, %v1598
      %v1638 = vpack.c.b16 %v1601, %v1600
      %v1639 = vpack.c.b16 %v1603, %v1602
      %v1640 = vpack.c.b16 %v1605, %v1604
      %v1641 = vpack.c.b16 %v1607, %v1606
      %v1642 = vpack.c.b16 %v1609, %v1608
      %v1643 = vpack.c.b16 %v1611, %v1610
      %1676 = vmatpush.bf16.msra.mxu0 %v1619
      %1677 = vmatpush.bf16.msra.mxu0 %v1618
      %1678 = vmatpush.bf16.msra.mxu0 %v1617
      %1679 = vmatpush.bf16.msra.mxu0 %v1616
      %1680 = vmatpush.bf16.msra.mxu0 %v1615
      %1681 = vmatpush.bf16.msra.mxu0 %v1614
      %1682 = vmatpush.bf16.msra.mxu0 %v1613
      %1683 = vmatpush.bf16.msra.mxu0 %v1612
      %1684 = vmatmul.bf16.gmra.mxu0 %v1384
      %v1685 = vpop.f32.mrf.mxu0
      %v1686 = vadd.f32 %v1482, %v1685
      %v1687 = vpop.f32.mrf.mxu0
      %v1688 = vadd.f32 %v1482, %v1687
      %1689 = vmatmul.bf16.gmra.mxu0 %v1388
      %v1690 = vpop.f32.mrf.mxu0
      %v1691 = vadd.f32 %v1482, %v1690
      %v1692 = vpop.f32.mrf.mxu0
      %v1693 = vadd.f32 %v1482, %v1692
      %1694 = vmatmul.bf16.gmra.mxu0 %v1392
      %v1695 = vpop.f32.mrf.mxu0
      %v1696 = vadd.f32 %v1482, %v1695
      %v1697 = vpop.f32.mrf.mxu0
      %v1698 = vadd.f32 %v1482, %v1697
      %1699 = vmatmul.bf16.gmra.mxu0 %v1396
      %v1700 = vpop.f32.mrf.mxu0
      %v1701 = vadd.f32 %v1482, %v1700
      %v1702 = vpop.f32.mrf.mxu0
      %v1703 = vadd.f32 %v1482, %v1702
      %1704 = vmatmul.bf16.gmra.mxu0 %v1400
      %v1705 = vpop.f32.mrf.mxu0
      %v1706 = vadd.f32 %v1482, %v1705
      %v1707 = vpop.f32.mrf.mxu0
      %v1708 = vadd.f32 %v1482, %v1707
      %1709 = vmatmul.bf16.gmra.mxu0 %v1404
      %v1710 = vpop.f32.mrf.mxu0
      %v1711 = vadd.f32 %v1482, %v1710
      %v1712 = vpop.f32.mrf.mxu0
      %v1713 = vadd.f32 %v1482, %v1712
      %1714 = vmatmul.bf16.gmra.mxu0 %v1408
      %v1715 = vpop.f32.mrf.mxu0
      %v1716 = vadd.f32 %v1482, %v1715
      %v1717 = vpop.f32.mrf.mxu0
      %v1718 = vadd.f32 %v1482, %v1717
      %1719 = vmatmul.bf16.gmra.mxu0 %v1412
      %v1720 = vpop.f32.mrf.mxu0
      %v1721 = vadd.f32 %v1482, %v1720
      %v1722 = vpop.f32.mrf.mxu0
      %v1723 = vadd.f32 %v1482, %v1722
      %1724 = vdwg.mxu0
      %1725 = vmatpush.bf16.msra.mxu0 %v1627
      %1726 = vmatpush.bf16.msra.mxu0 %v1626
      %1727 = vmatpush.bf16.msra.mxu0 %v1625
      %1728 = vmatpush.bf16.msra.mxu0 %v1624
      %1729 = vmatpush.bf16.msra.mxu0 %v1623
      %1730 = vmatpush.bf16.msra.mxu0 %v1622
      %1731 = vmatpush.bf16.msra.mxu0 %v1621
      %1732 = vmatpush.bf16.msra.mxu0 %v1620
      %1733 = vmatmul.bf16.gmra.mxu0 %v1385
      %v1734 = vpop.f32.mrf.mxu0
      %v1735 = vadd.f32 %v1686, %v1734
      %v1736 = vpop.f32.mrf.mxu0
      %v1737 = vadd.f32 %v1688, %v1736
      %1738 = vmatmul.bf16.gmra.mxu0 %v1389
      %v1739 = vpop.f32.mrf.mxu0
      %v1740 = vadd.f32 %v1691, %v1739
      %v1741 = vpop.f32.mrf.mxu0
      %v1742 = vadd.f32 %v1693, %v1741
      %1743 = vmatmul.bf16.gmra.mxu0 %v1393
      %v1744 = vpop.f32.mrf.mxu0
      %v1745 = vadd.f32 %v1696, %v1744
      %v1746 = vpop.f32.mrf.mxu0
      %v1747 = vadd.f32 %v1698, %v1746
      %1748 = vmatmul.bf16.gmra.mxu0 %v1397
      %v1749 = vpop.f32.mrf.mxu0
      %v1750 = vadd.f32 %v1701, %v1749
      %v1751 = vpop.f32.mrf.mxu0
      %v1752 = vadd.f32 %v1703, %v1751
      %1753 = vmatmul.bf16.gmra.mxu0 %v1401
      %v1754 = vpop.f32.mrf.mxu0
      %v1755 = vadd.f32 %v1706, %v1754
      %v1756 = vpop.f32.mrf.mxu0
      %v1757 = vadd.f32 %v1708, %v1756
      %1758 = vmatmul.bf16.gmra.mxu0 %v1405
      %v1759 = vpop.f32.mrf.mxu0
      %v1760 = vadd.f32 %v1711, %v1759
      %v1761 = vpop.f32.mrf.mxu0
      %v1762 = vadd.f32 %v1713, %v1761
      %1763 = vmatmul.bf16.gmra.mxu0 %v1409
      %v1764 = vpop.f32.mrf.mxu0
      %v1765 = vadd.f32 %v1716, %v1764
      %v1766 = vpop.f32.mrf.mxu0
      %v1767 = vadd.f32 %v1718, %v1766
      %1768 = vmatmul.bf16.gmra.mxu0 %v1413
      %v1769 = vpop.f32.mrf.mxu0
      %v1770 = vadd.f32 %v1721, %v1769
      %v1771 = vpop.f32.mrf.mxu0
      %v1772 = vadd.f32 %v1723, %v1771
      %1773 = vdwg.mxu0
      %1774 = vmatpush.bf16.msra.mxu0 %v1635
      %1775 = vmatpush.bf16.msra.mxu0 %v1634
      %1776 = vmatpush.bf16.msra.mxu0 %v1633
      %1777 = vmatpush.bf16.msra.mxu0 %v1632
      %1778 = vmatpush.bf16.msra.mxu0 %v1631
      %1779 = vmatpush.bf16.msra.mxu0 %v1630
      %1780 = vmatpush.bf16.msra.mxu0 %v1629
      %1781 = vmatpush.bf16.msra.mxu0 %v1628
      %1782 = vmatmul.bf16.gmra.mxu0 %v1386
      %v1783 = vpop.f32.mrf.mxu0
      %v1784 = vadd.f32 %v1735, %v1783
      %v1785 = vpop.f32.mrf.mxu0
      %v1786 = vadd.f32 %v1737, %v1785
      %1787 = vmatmul.bf16.gmra.mxu0 %v1390
      %v1788 = vpop.f32.mrf.mxu0
      %v1789 = vadd.f32 %v1740, %v1788
      %v1790 = vpop.f32.mrf.mxu0
      %v1791 = vadd.f32 %v1742, %v1790
      %1792 = vmatmul.bf16.gmra.mxu0 %v1394
      %v1793 = vpop.f32.mrf.mxu0
      %v1794 = vadd.f32 %v1745, %v1793
      %v1795 = vpop.f32.mrf.mxu0
      %v1796 = vadd.f32 %v1747, %v1795
      %1797 = vmatmul.bf16.gmra.mxu0 %v1398
      %v1798 = vpop.f32.mrf.mxu0
      %v1799 = vadd.f32 %v1750, %v1798
      %v1800 = vpop.f32.mrf.mxu0
      %v1801 = vadd.f32 %v1752, %v1800
      %1802 = vmatmul.bf16.gmra.mxu0 %v1402
      %v1803 = vpop.f32.mrf.mxu0
      %v1804 = vadd.f32 %v1755, %v1803
      %v1805 = vpop.f32.mrf.mxu0
      %v1806 = vadd.f32 %v1757, %v1805
      %1807 = vmatmul.bf16.gmra.mxu0 %v1406
      %v1808 = vpop.f32.mrf.mxu0
      %v1809 = vadd.f32 %v1760, %v1808
      %v1810 = vpop.f32.mrf.mxu0
      %v1811 = vadd.f32 %v1762, %v1810
      %1812 = vmatmul.bf16.gmra.mxu0 %v1410
      %v1813 = vpop.f32.mrf.mxu0
      %v1814 = vadd.f32 %v1765, %v1813
      %v1815 = vpop.f32.mrf.mxu0
      %v1816 = vadd.f32 %v1767, %v1815
      %1817 = vmatmul.bf16.gmra.mxu0 %v1414
      %v1818 = vpop.f32.mrf.mxu0
      %v1819 = vadd.f32 %v1770, %v1818
      %v1820 = vpop.f32.mrf.mxu0
      %v1821 = vadd.f32 %v1772, %v1820
      %1822 = vdwg.mxu0
      %1823 = vmatpush.bf16.msra.mxu0 %v1643
      %1824 = vmatpush.bf16.msra.mxu0 %v1642
      %1825 = vmatpush.bf16.msra.mxu0 %v1641
      %1826 = vmatpush.bf16.msra.mxu0 %v1640
      %1827 = vmatpush.bf16.msra.mxu0 %v1639
      %1828 = vmatpush.bf16.msra.mxu0 %v1638
      %1829 = vmatpush.bf16.msra.mxu0 %v1637
      %1830 = vmatpush.bf16.msra.mxu0 %v1636
      %1831 = vmatmul.bf16.gmra.mxu0 %v1387
      %v1832 = vpop.f32.mrf.mxu0
      %v1833 = vadd.f32 %v1784, %v1832
      %v1834 = vpop.f32.mrf.mxu0
      %v1835 = vadd.f32 %v1786, %v1834
      %1836 = vmatmul.bf16.gmra.mxu0 %v1391
      %v1837 = vpop.f32.mrf.mxu0
      %v1838 = vadd.f32 %v1789, %v1837
      %v1839 = vpop.f32.mrf.mxu0
      %v1840 = vadd.f32 %v1791, %v1839
      %1841 = vmatmul.bf16.gmra.mxu0 %v1395
      %v1842 = vpop.f32.mrf.mxu0
      %v1843 = vadd.f32 %v1794, %v1842
      %v1844 = vpop.f32.mrf.mxu0
      %v1845 = vadd.f32 %v1796, %v1844
      %1846 = vmatmul.bf16.gmra.mxu0 %v1399
      %v1847 = vpop.f32.mrf.mxu0
      %v1848 = vadd.f32 %v1799, %v1847
      %v1849 = vpop.f32.mrf.mxu0
      %v1850 = vadd.f32 %v1801, %v1849
      %1851 = vmatmul.bf16.gmra.mxu0 %v1403
      %v1852 = vpop.f32.mrf.mxu0
      %v1853 = vadd.f32 %v1804, %v1852
      %v1854 = vpop.f32.mrf.mxu0
      %v1855 = vadd.f32 %v1806, %v1854
      %1856 = vmatmul.bf16.gmra.mxu0 %v1407
      %v1857 = vpop.f32.mrf.mxu0
      %v1858 = vadd.f32 %v1809, %v1857
      %v1859 = vpop.f32.mrf.mxu0
      %v1860 = vadd.f32 %v1811, %v1859
      %1861 = vmatmul.bf16.gmra.mxu0 %v1411
      %v1862 = vpop.f32.mrf.mxu0
      %v1863 = vadd.f32 %v1814, %v1862
      %v1864 = vpop.f32.mrf.mxu0
      %v1865 = vadd.f32 %v1816, %v1864
      %1866 = vmatmul.bf16.gmra.mxu0 %v1415
      %v1867 = vpop.f32.mrf.mxu0
      %v1868 = vadd.f32 %v1819, %v1867
      %v1869 = vpop.f32.mrf.mxu0
      %v1870 = vadd.f32 %v1821, %v1869
      %1871 = vdwg.mxu0
      %v1872 = vtanh.pop %v1833
      %v1873 = vtanh.pop %v1835
      %v1874 = vtanh.pop %v1838
      %v1875 = vtanh.pop %v1840
      %v1876 = vtanh.pop %v1843
      %v1877 = vtanh.pop %v1845
      %v1878 = vtanh.pop %v1848
      %v1879 = vtanh.pop %v1850
      %v1880 = vtanh.pop %v1853
      %v1881 = vtanh.pop %v1855
      %v1882 = vtanh.pop %v1858
      %v1883 = vtanh.pop %v1860
      %v1884 = vtanh.pop %v1863
      %v1885 = vtanh.pop %v1865
      %v1886 = vtanh.pop %v1868
      %v1887 = vtanh.pop %v1870
      %v1888 = vld [vmem:[%s5] sm:$0xff]
      %v1889 = vld [vmem:[%s5 + $0x8] sm:$0xff]
      %v1890 = vld [vmem:[%s5 + $0x10] sm:$0xff]
      %v1891 = vld [vmem:[%s5 + $0x18] sm:$0xff]
      %v1892 = vld [vmem:[%s5 + $0x20] sm:$0xff]
      %v1893 = vld [vmem:[%s5 + $0x28] sm:$0xff]
      %v1894 = vld [vmem:[%s5 + $0x30] sm:$0xff]
      %v1895 = vld [vmem:[%s5 + $0x38] sm:$0xff]
      %v1896 = vld [vmem:[%s5 + $0x40] sm:$0xff]
      %v1897 = vld [vmem:[%s5 + $0x48] sm:$0xff]
      %v1898 = vld [vmem:[%s5 + $0x50] sm:$0xff]
      %v1899 = vld [vmem:[%s5 + $0x58] sm:$0xff]
      %v1900 = vld [vmem:[%s5 + $0x60] sm:$0xff]
      %v1901 = vld [vmem:[%s5 + $0x68] sm:$0xff]
      %v1902 = vld [vmem:[%s5 + $0x70] sm:$0xff]
      %v1903 = vld [vmem:[%s5 + $0x78] sm:$0xff]
      %1904 = vmatpush.msra.mxu0 %v1903
      %1905 = vmatpush.msra.mxu0 %v1902
      %1906 = vmatpush.msra.mxu0 %v1901
      %1907 = vmatpush.msra.mxu0 %v1900
      %1908 = vmatpush.msra.mxu0 %v1899
      %1909 = vmatpush.msra.mxu0 %v1898
      %1910 = vmatpush.msra.mxu0 %v1897
      %1911 = vmatpush.msra.mxu0 %v1896
      %1912 = vmatpush.msra.mxu0 %v1895
      %1913 = vmatpush.msra.mxu0 %v1894
      %1914 = vmatpush.msra.mxu0 %v1893
      %1915 = vmatpush.msra.mxu0 %v1892
      %1916 = vmatpush.msra.mxu0 %v1891
      %1917 = vmatpush.msra.mxu0 %v1890
      %1918 = vmatpush.msra.mxu0 %v1889
      %1919 = vmatpush.msra.mxu0 %v1888
      %1920 = vmatmul.f32.gmra.mxu0 %v1872
      %v1921 = vpop.f32.mrf.mxu0
      %v1922 = vadd.f32 0.0, %v1921
      %1923 = vmatmul.f32.gmra.mxu0 %v1873
      %v1924 = vpop.f32.mrf.mxu0
      %v1925 = vadd.f32 0.0, %v1924
      %1926 = vmatmul.f32.gmra.mxu0 %v1874
      %v1927 = vpop.f32.mrf.mxu0
      %v1928 = vadd.f32 0.0, %v1927
      %1929 = vmatmul.f32.gmra.mxu0 %v1875
      %v1930 = vpop.f32.mrf.mxu0
      %v1931 = vadd.f32 0.0, %v1930
      %1932 = vmatmul.f32.gmra.mxu0 %v1876
      %v1933 = vpop.f32.mrf.mxu0
      %v1934 = vadd.f32 0.0, %v1933
      %1935 = vmatmul.f32.gmra.mxu0 %v1877
      %v1936 = vpop.f32.mrf.mxu0
      %v1937 = vadd.f32 0.0, %v1936
      %1938 = vmatmul.f32.gmra.mxu0 %v1878
      %v1939 = vpop.f32.mrf.mxu0
      %v1940 = vadd.f32 0.0, %v1939
      %1941 = vmatmul.f32.gmra.mxu0 %v1879
      %v1942 = vpop.f32.mrf.mxu0
      %v1943 = vadd.f32 0.0, %v1942
      %1944 = vmatmul.f32.gmra.mxu0 %v1880
      %v1945 = vpop.f32.mrf.mxu0
      %v1946 = vadd.f32 0.0, %v1945
      %1947 = vmatmul.f32.gmra.mxu0 %v1881
      %v1948 = vpop.f32.mrf.mxu0
      %v1949 = vadd.f32 0.0, %v1948
      %1950 = vmatmul.f32.gmra.mxu0 %v1882
      %v1951 = vpop.f32.mrf.mxu0
      %v1952 = vadd.f32 0.0, %v1951
      %1953 = vmatmul.f32.gmra.mxu0 %v1883
      %v1954 = vpop.f32.mrf.mxu0
      %v1955 = vadd.f32 0.0, %v1954
      %1956 = vmatmul.f32.gmra.mxu0 %v1884
      %v1957 = vpop.f32.mrf.mxu0
      %v1958 = vadd.f32 0.0, %v1957
      %1959 = vmatmul.f32.gmra.mxu0 %v1885
      %v1960 = vpop.f32.mrf.mxu0
      %v1961 = vadd.f32 0.0, %v1960
      %1962 = vmatmul.f32.gmra.mxu0 %v1886
      %v1963 = vpop.f32.mrf.mxu0
      %v1964 = vadd.f32 0.0, %v1963
      %1965 = vmatmul.f32.gmra.mxu0 %v1887
      %v1966 = vpop.f32.mrf.mxu0
      %v1967 = vadd.f32 0.0, %v1966
      %1968 = vdwg.mxu0
      %1969 = vxpose.xlu0.b32.start [1/16] %v1922, 128
      %1970 = vxpose.xlu0.b32.cont [2/16] %v1925, 128
      %1971 = vxpose.xlu0.b32.cont [3/16] %v1928, 128
      %1972 = vxpose.xlu0.b32.cont [4/16] %v1931, 128
      %1973 = vxpose.xlu0.b32.cont [5/16] %v1934, 128
      %1974 = vxpose.xlu0.b32.cont [6/16] %v1937, 128
      %1975 = vxpose.xlu0.b32.cont [7/16] %v1940, 128
      %1976 = vxpose.xlu0.b32.cont [8/16] %v1943, 128
      %1977 = vxpose.xlu0.b32.cont [9/16] %v1946, 128
      %1978 = vxpose.xlu0.b32.cont [10/16] %v1949, 128
      %1979 = vxpose.xlu0.b32.cont [11/16] %v1952, 128
      %1980 = vxpose.xlu0.b32.cont [12/16] %v1955, 128
      %1981 = vxpose.xlu0.b32.cont [13/16] %v1958, 128
      %1982 = vxpose.xlu0.b32.cont [14/16] %v1961, 128
      %1983 = vxpose.xlu0.b32.cont [15/16] %v1964, 128
      %1984 = vxpose.xlu0.b32.end [16/16] %v1967, 128
      %v1985 = vpop.trf.xlu0
      %v1986 = vpop.trf.xlu0
      %v1987 = vpop.trf.xlu0
      %v1988 = vpop.trf.xlu0
      %v1989 = vpop.trf.xlu0
      %v1990 = vpop.trf.xlu0
      %v1991 = vpop.trf.xlu0
      %v1992 = vpop.trf.xlu0
      %v1993 = vpop.trf.xlu0
      %v1994 = vpop.trf.xlu0
      %v1995 = vpop.trf.xlu0
      %v1996 = vpop.trf.xlu0
      %v1997 = vpop.trf.xlu0
      %v1998 = vpop.trf.xlu0
      %v1999 = vpop.trf.xlu0
      %v2000 = vpop.trf.xlu0
      %v2001 = vld [vmem:[#allocation2] sm:$0x1]
      %2003 = vset.pattern.permute.xlu0 0
      %2004 = vperm.xlu0 %2003, %v2001
      %v2005 = vpop.permute.xlu0 %2004
      %v2007 = vperm.slane %v2005, 0
      %v2008 = vadd.f32 %v1985, %v2007
      %v2009 = vlaneseq
      %v2010 = vand.u32 %v2009, 127
      %s2011 = smul.u32 %s28, 2
      %s2012 = sadd.s32 %s2011, %s29
      %s2013 = smul.u32 %s2012, 128
      %v2014 = vstv %s2013
      %v2015 = vadd.s32 %v2014, %v2010
      %vm2016 = vcmp.lt.s32.totalorder %v2015, 300
      %v2017 = vsel %vm2016, %v2008, -inf
      %2018 = vst [vmem:[%s413] sm:$0x1] %v2017
      %v2019 = vld [vmem:[%s418] sm:$0x1]
      %vm2020 = vcmask 1040384
      %v2021 = vsel %vm2020, %v2017, -inf
      %2022 = vmax.xlane.f32.xlu0 %v2021
      %v2023 = vpop.xlane.xlu0 %2022
      %v2024 = vmax.f32 %v2019, %v2023
      %v2025 = vsub.f32 %v2019, %v2024
      %v2026 = vmul.f32 %v2025, 1.442695
      %v2027 = vpow.pop %v2026
      %2029 = vset.pattern.permute.xlu0 0
      %2030 = vperm.xlu0 %2029, %v2024
      %v2031 = vpop.permute.xlu0 %2030
      %v2033 = vperm.slane %v2031, 0
      %v2034 = vsub.f32 %v2017, %v2033
      %v2035 = vmul.f32 %v2034, 1.442695
      %v2036 = vpow.pop %v2035
      %v2037 = vld [vmem:[%s421] sm:$0x1]
      %v2038 = vmul.f32 %v2027, %v2037
      %v2039 = vsel %vm2020, %v2036, 0.0
      %2040 = vadd.xlane.f32.xlu0 %v2039
      %v2041 = vpop.xlane.xlu0 %2040
      %v2042 = vadd.f32 %v2038, %v2041
      %vm2043 = vcmask 0
      %2044 = vst.msk [vmem:[%s421] sm:$0x1] %vm2043, %v2042
      %v2045 = vld [vmem:[%s425] sm:$0xf]
      %2047 = vset.pattern.permute.xlu0 0
      %2048 = vperm.xlu0 %2047, %v2027
      %v2049 = vpop.permute.xlu0 %2048
      %v2051 = vperm.slane %v2049, 0
      %v2052 = vmul.f32 %v2051, %v2045
      %v2053 = vpack.c.bf16 %v2036, %v2036
      %2054 = vmatpush.bf16.msra.mxu0 %v1412
      %2055 = vmatpush.bf16.msra.mxu0 %v1408
      %2056 = vmatpush.bf16.msra.mxu0 %v1404
      %2057 = vmatpush.bf16.msra.mxu0 %v1400
      %2058 = vmatpush.bf16.msra.mxu0 %v1396
      %2059 = vmatpush.bf16.msra.mxu0 %v1392
      %2060 = vmatpush.bf16.msra.mxu0 %v1388
      %2061 = vmatpush.bf16.msra.mxu0 %v1384
      %2062 = vmatmul.bf16.gmra.mxu0 %v2053
      %v2063 = vpop.f32.mrf.mxu0
      %v2064 = vadd.f32 0.0, %v2063
      %v2065 = vpop.f32.mrf.mxu0
      %2066 = vdwg.mxu0
      %2067 = vmatpush.bf16.msra.mxu0 %v1413
      %2068 = vmatpush.bf16.msra.mxu0 %v1409
      %2069 = vmatpush.bf16.msra.mxu0 %v1405
      %2070 = vmatpush.bf16.msra.mxu0 %v1401
      %2071 = vmatpush.bf16.msra.mxu0 %v1397
      %2072 = vmatpush.bf16.msra.mxu0 %v1393
      %2073 = vmatpush.bf16.msra.mxu0 %v1389
      %2074 = vmatpush.bf16.msra.mxu0 %v1385
      %2075 = vmatmul.bf16.gmra.mxu0 %v2053
      %v2076 = vpop.f32.mrf.mxu0
      %v2077 = vadd.f32 0.0, %v2076
      %v2078 = vpop.f32.mrf.mxu0
      %2079 = vdwg.mxu0
      %2080 = vmatpush.bf16.msra.mxu0 %v1414
      %2081 = vmatpush.bf16.msra.mxu0 %v1410
      %2082 = vmatpush.bf16.msra.mxu0 %v1406
      %2083 = vmatpush.bf16.msra.mxu0 %v1402
      %2084 = vmatpush.bf16.msra.mxu0 %v1398
      %2085 = vmatpush.bf16.msra.mxu0 %v1394
      %2086 = vmatpush.bf16.msra.mxu0 %v1390
      %2087 = vmatpush.bf16.msra.mxu0 %v1386
      %2088 = vmatmul.bf16.gmra.mxu0 %v2053
      %v2089 = vpop.f32.mrf.mxu0
      %v2090 = vadd.f32 0.0, %v2089
      %v2091 = vpop.f32.mrf.mxu0
      %2092 = vdwg.mxu0
      %2093 = vmatpush.bf16.msra.mxu0 %v1415
      %2094 = vmatpush.bf16.msra.mxu0 %v1411
      %2095 = vmatpush.bf16.msra.mxu0 %v1407
      %2096 = vmatpush.bf16.msra.mxu0 %v1403
      %2097 = vmatpush.bf16.msra.mxu0 %v1399
      %2098 = vmatpush.bf16.msra.mxu0 %v1395
      %2099 = vmatpush.bf16.msra.mxu0 %v1391
      %2100 = vmatpush.bf16.msra.mxu0 %v1387
      %2101 = vmatmul.bf16.gmra.mxu0 %v2053
      %v2102 = vpop.f32.mrf.mxu0
      %v2103 = vadd.f32 0.0, %v2102
      %v2104 = vpop.f32.mrf.mxu0
      %2105 = vdwg.mxu0
      %v2110 = vrot.slane %v2077, 7
      %v2111 = vrot.slane %v2090, 6
      %v2112 = vrot.slane %v2103, 5
      %v2113 = vsel %vm2020, %v2064, %v2110
      %vm2114 = vcmask 1042434
      %v2115 = vsel %vm2114, %v2111, %v2112
      %vm2116 = vcmask 1041408
      %v2117 = vsel %vm2116, %v2113, %v2115
      %v2119 = vadd.f32 %v2052, %v2117
      %v2120 = vlaneseq
      %vm2121 = vcmp.ge.s32.totalorder %v2120, 0
      %vm2122 = vcmp.lt.s32.totalorder %v2120, 512
      %vm2123 = vmand %vm2121, %vm2122
      %2124 = vst.msk [vmem:[%s425] sm:$0xf] %vm2123, %v2119
      %2125 = vst.msk [vmem:[%s418] sm:$0x1] %vm2043, %v2024
      %s2126 = smul.u32 %s28, 2
      %s2127 = sadd.s32 %s2126, %s29
      %p2128 = scmp.lt.s32.totalorder %s2127, 3
      %s2129 = scalar_select %p2128, %s2127, 3
      %s2130 = scalar_lea.vmem %s7, %s2129
      %p2131 = scmp.lt.s32.totalorder %s28, 1
      %s2132 = scalar_select %p2131, %s28, 1
      %s2133 = scalar_lea.vmem %s8, %s2132
      %p2134 = scmp.lt.s32.totalorder %s28, 1
      %s2135 = scalar_select %p2134, %s28, 1
      %s2136 = scalar_lea.vmem %s9, %s2135
      %p2137 = scmp.lt.s32.totalorder %s28, 1
      %s2138 = scalar_select %p2137, %s28, 1
      %s2139 = smul.addr %s2138, 4
      %s2140 = scalar_lea.vmem %s10, %s2139
      // Predicated region
      $region53: #{dattention_forward.1} parent=47 // pred_check
        %p2141 = pneg %p214
      $region54: #{dattention_forward.1} parent=47 // pred_check_branch
        %2143 = sbr.rel (%p2141) target = $region56
      $region55: #{dattention_forward.1} parent=47 // pred_region
        %s2144 = smul.u32 %s28, 2
        %s2145 = sadd.s32 %s2144, %s29
      $region56: #{dattention_forward.1} parent=47 // pred_fallthru
        _
      // Predicated region
      $region57: #{dattention_forward.1} parent=47 // pred_check
        %p2146 = pneg %p240
      $region58: #{dattention_forward.1} parent=47 // pred_check_branch
        %2148 = sbr.rel (%p2146) target = $region60
      $region59: #{dattention_forward.1} parent=47 // pred_region
        _
      $region60: #{dattention_forward.1} parent=47 // pred_fallthru
        _
      // Predicated region
      $region61: #{dattention_forward.1} parent=47 // pred_check
        %p2149 = pneg %p266
      $region62: #{dattention_forward.1} parent=47 // pred_check_branch
        %2151 = sbr.rel (%p2149) target = $region64
      $region63: #{dattention_forward.1} parent=47 // pred_region
        _
      $region64: #{dattention_forward.1} parent=47 // pred_fallthru
        _
      // Predicated region
      $region65: #{dattention_forward.1} parent=47 // pred_check
        %p2152 = pneg %p292
      $region66: #{dattention_forward.1} parent=47 // pred_check_branch
        %2154 = sbr.rel (%p2152) target = $region68
      $region67: #{dattention_forward.1} parent=47 // pred_region
        _
      $region68: #{dattention_forward.1} parent=47 // pred_fallthru
        _
    $region48: #{dattention_forward.1} parent=5 // pred_fallthru
      _
    %p2155 = scmp.le.s32.totalorder 2, %s19
    // Predicated region
    $region69: #{dattention_forward.1} parent=5 // pred_check
      %p2156 = pneg %p2155
    $region70: #{dattention_forward.1} parent=5 // pred_check_branch
      %2158 = sbr.rel (%p2156) target = $region72
    $region71: #{dattention_forward.1} parent=5 // pred_region
      %s2159 = ssub.s32 %s19, 2
      // Predicated region
      $region73: #{dattention_forward.1} parent=71 // pred_check
        %p2160 = pneg %p220
      $region74: #{dattention_forward.1} parent=71 // pred_check_branch
        %2162 = sbr.rel (%p2160) target = $region76
      $region75: #{dattention_forward.1} parent=71 // pred_region
        %s2163 = smul.u32 %s30, 2
        %s2164 = sadd.s32 %s2163, %s31
        %p2165 = scmp.lt.s32.totalorder %s2164, 3
        %s2166 = scalar_select %p2165, %s2164, 3
        %s2167 = scalar_lea.vmem %s7, %s2166
      $region76: #{dattention_forward.1} parent=71 // pred_fallthru
        _
      // Predicated region
      $region77: #{dattention_forward.1} parent=71 // pred_check
        %p2168 = pneg %p246
      $region78: #{dattention_forward.1} parent=71 // pred_check_branch
        %2170 = sbr.rel (%p2168) target = $region80
      $region79: #{dattention_forward.1} parent=71 // pred_region
        %p2171 = scmp.lt.s32.totalorder %s30, 1
        %s2172 = scalar_select %p2171, %s30, 1
        %s2173 = scalar_lea.vmem %s8, %s2172
      $region80: #{dattention_forward.1} parent=71 // pred_fallthru
        _
      // Predicated region
      $region81: #{dattention_forward.1} parent=71 // pred_check
        %p2174 = pneg %p272
      $region82: #{dattention_forward.1} parent=71 // pred_check_branch
        %2176 = sbr.rel (%p2174) target = $region84
      $region83: #{dattention_forward.1} parent=71 // pred_region
        %p2177 = scmp.lt.s32.totalorder %s30, 1
        %s2178 = scalar_select %p2177, %s30, 1
        %s2179 = scalar_lea.vmem %s9, %s2178
      $region84: #{dattention_forward.1} parent=71 // pred_fallthru
        _
      // Predicated region
      $region85: #{dattention_forward.1} parent=71 // pred_check
        %p2180 = pneg %p298
      $region86: #{dattention_forward.1} parent=71 // pred_check_branch
        %2182 = sbr.rel (%p2180) target = $region88
      $region87: #{dattention_forward.1} parent=71 // pred_region
        %p2183 = scmp.lt.s32.totalorder %s30, 1
        %s2184 = scalar_select %p2183, %s30, 1
        %s2185 = smul.addr %s2184, 4
        %s2186 = scalar_lea.vmem %s10, %s2185
      $region88: #{dattention_forward.1} parent=71 // pred_fallthru
        _
    $region72: #{dattention_forward.1} parent=5 // pred_fallthru
      _
  $region6: #{dattention_forward.1} parent=0 // loop_footer
    %s23 = sadd.s32 1, %s19
  $region7: #{dattention_forward.1} parent=0 // loop_footer_branch
    %18 = sbr.rel target = $region3
  $region8: #{dattention_forward.1} parent=0 // loop_exit
    _

</llo_original>
